<compile_context>
chip_gen: v6e
topology: v6e:2x2x1
jax: 0.10.0
libtpu: 0.0.40
codegen_flags: <defaults>
</compile_context>

<pallas_src>
import math
import functools

import jax
import jax.numpy as jnp
from jax import lax
from jax.experimental import pallas as pl
from jax.experimental.pallas import tpu as pltpu

LOG2PI = math.log(2.0 * math.pi)


def _vmem_spec():
    # Whole array resident in VMEM, no grid (arrays here are tiny).
    return pl.BlockSpec(memory_space=pltpu.MemorySpace.VMEM)


def _sum_all_keepdims(a):
    # (B, N) -> (1, 1): lane reduce first, then sublane reduce (avoids rank-0).
    return jnp.sum(jnp.sum(a, axis=-1, keepdims=True), axis=0, keepdims=True)


# ----------------------------------------------------------------------------
# Single fused kernel: encoder -> [SVI step]*n -> final ELBO loss.
# ----------------------------------------------------------------------------
def _savae_fused_kernel(n_svi_step, svi_lr,
                        x_ref, eps_ref,
                        e1w_ref, e1b_ref, e2w_ref, e2b_ref,
                        emw_ref, emb_ref, elw_ref, elb_ref,
                        d1w_ref, d1b_ref, d2w_ref, d2b_ref, dhw_ref, dhb_ref,
                        d1wt_ref, d2wt_ref, dhwt_ref,
                        o_ref):
    x = x_ref[...]
    B, D = x.shape
    s = -1.0 / B                      # loss = -(1/B) * sum_b (...)

    # Loop-invariant decoder weights: loaded once, resident in vregs/VMEM.
    d1w, d1b = d1w_ref[...], d1b_ref[...]
    d2w, d2b = d2w_ref[...], d2b_ref[...]
    dhw, dhb = dhw_ref[...], dhb_ref[...]
    d1wt, d2wt, dhwt = d1wt_ref[...], d2wt_ref[...], dhwt_ref[...]

    # ---- encoder: relu(L1) -> relu(L2) -> (mu, logvar) heads ----
    h = jnp.maximum(
        jnp.dot(x, e1w_ref[...], preferred_element_type=jnp.float32) + e1b_ref[...], 0.0)
    h = jnp.maximum(
        jnp.dot(h, e2w_ref[...], preferred_element_type=jnp.float32) + e2b_ref[...], 0.0)
    mu = jnp.dot(h, emw_ref[...], preferred_element_type=jnp.float32) + emb_ref[...]
    lv = jnp.dot(h, elw_ref[...], preferred_element_type=jnp.float32) + elb_ref[...]

    def decode(z):
        h1 = jnp.maximum(jnp.dot(z, d1w, preferred_element_type=jnp.float32) + d1b, 0.0)
        h2 = jnp.maximum(jnp.dot(h1, d2w, preferred_element_type=jnp.float32) + d2b, 0.0)
        dh = jnp.dot(h2, dhw, preferred_element_type=jnp.float32) + dhb
        return h1, h2, dh[:, :D], dh[:, D:]          # lane-aligned split (D=256)

    def clip5(g):
        # torch-style clip_grad_norm for a single tensor (max_norm=5).
        nrm = jnp.sqrt(_sum_all_keepdims(g * g))      # (1, 1)
        coef = jnp.minimum(1.0, 5.0 / (nrm + 1e-6))
        return g * coef

    # ---- SVI refinement steps (n_svi_step is static -> unrolled) ----
    for i in range(n_svi_step):
        eps = eps_ref[i]                              # (B, z_dim)
        sig = jnp.exp(0.5 * lv)
        z = mu + eps * sig
        h1, h2, dec_mu, dec_lv = decode(z)

        # d(loss)/d(decoder outputs)
        e_ndlv = jnp.exp(-dec_lv)
        r = x - dec_mu
        g_dmu = s * r * e_ndlv
        g_dlv = s * (-0.5 + 0.5 * r * r * e_ndlv)
        g_dh = jnp.concatenate([g_dmu, g_dlv], axis=-1)   # (B, 2*D)

        # Backprop through decoder MLP with pre-transposed weights (no XLU
        # transposes of loop-invariant weights inside the hot loop).
        g_h2 = jnp.dot(g_dh, dhwt, preferred_element_type=jnp.float32)
        g_pre2 = jnp.where(h2 > 0.0, g_h2, 0.0)
        g_h1 = jnp.dot(g_pre2, d2wt, preferred_element_type=jnp.float32)
        g_pre1 = jnp.where(h1 > 0.0, g_h1, 0.0)
        g_z_dec = jnp.dot(g_pre1, d1wt, preferred_element_type=jnp.float32)

        # Direct terms of log p(z) and -log q(z|x), then chain rule through
        # z = mu + eps * exp(0.5 * lv).
        e_nlv = jnp.exp(-lv)
        d_ = z - mu
        g_z = g_z_dec - s * z + s * d_ * e_nlv
        gmu = g_z - s * d_ * e_nlv
        glv = g_z * (0.5 * eps * sig) + s * (0.5 - 0.5 * d_ * d_ * e_nlv)

        # NOTE: the reference PyTorch code *adds* svi_lr * grad; reproduced as-is.
        mu = mu + svi_lr * clip5(gmu)
        lv = lv + svi_lr * clip5(glv)

    # ---- final sample + ELBO loss ----
    eps_K = eps_ref[n_svi_step]
    z = mu + eps_K * jnp.exp(0.5 * lv)
    _, _, dec_mu, dec_lv = decode(z)
    logp_x = -0.5 * jnp.sum(
        LOG2PI + dec_lv + (x - dec_mu) ** 2 * jnp.exp(-dec_lv), axis=-1, keepdims=True)
    logp_z = -0.5 * jnp.sum(LOG2PI + z * z, axis=-1, keepdims=True)
    logq_z = -0.5 * jnp.sum(
        LOG2PI + lv + (z - mu) ** 2 * jnp.exp(-lv), axis=-1, keepdims=True)
    per_row = logp_x + logp_z - logq_z                # (B, 1)
    o_ref[...] = -(jnp.sum(per_row, axis=0, keepdims=True) / B)


def _savae_pallas_call(params, x_flat, eps_all, svi_lr, n_svi_step):
    kern = functools.partial(_savae_fused_kernel, int(n_svi_step), float(svi_lr))
    args = (x_flat, eps_all,
            params["e1_w"], params["e1_b"], params["e2_w"], params["e2_b"],
            params["emu_w"], params["emu_b"], params["elv_w"], params["elv_b"],
            params["d1_w"], params["d1_b"], params["d2_w"], params["d2_b"],
            params["dh_w"], params["dh_b"],
            params["d1_wt"], params["d2_wt"], params["dh_wt"])
    out = pl.pallas_call(
        kern,
        out_shape=jax.ShapeDtypeStruct((1, 1), jnp.float32),
        in_specs=[_vmem_spec()] * len(args),
        out_specs=_vmem_spec(),
    )(*args)
    return out[0, 0]


# ----------------------------------------------------------------------------
# Parameter init (mu/logvar decoder heads concatenated for a lane-dense 2*D
# output; transposed decoder weights stored once for the in-kernel backward).
# ----------------------------------------------------------------------------
def init_params(key, image_size, z_dim, enc_dim, dec_dim):
    def dense(k, fan_in, fan_out):
        scale = 1.0 / math.sqrt(fan_in)
        w = jax.random.uniform(k, (fan_in, fan_out), jnp.float32, -scale, scale)
        b = jnp.zeros((1, fan_out), jnp.float32)
        return w, b

    ks = jax.random.split(key, 8)
    p = {}
    p["e1_w"], p["e1_b"] = dense(ks[0], image_size, enc_dim)
    p["e2_w"], p["e2_b"] = dense(ks[1], enc_dim, enc_dim)
    p["emu_w"], p["emu_b"] = dense(ks[2], enc_dim, z_dim)
    p["elv_w"], p["elv_b"] = dense(ks[3], enc_dim, z_dim)
    p["d1_w"], p["d1_b"] = dense(ks[4], z_dim, dec_dim)
    p["d2_w"], p["d2_b"] = dense(ks[5], dec_dim, dec_dim)
    dmu_w, dmu_b = dense(ks[6], dec_dim, image_size)
    dlv_w, dlv_b = dense(ks[7], dec_dim, image_size)
    p["dh_w"] = jnp.concatenate([dmu_w, dlv_w], axis=1)      # (dec_dim, 2*image)
    p["dh_b"] = jnp.concatenate([dmu_b, dlv_b], axis=1)
    # Pre-transposed (loop-invariant) decoder weights for the backward pass.
    p["d1_wt"] = p["d1_w"].T
    p["d2_wt"] = p["d2_w"].T
    p["dh_wt"] = p["dh_w"].T
    return p


# ----------------------------------------------------------------------------
# SAVAE.forward — single fused Pallas launch.
# ----------------------------------------------------------------------------
@functools.partial(jax.jit, static_argnames=("svi_lr", "n_svi_step"))
def savae_forward(params, x, key, svi_lr=0.1, n_svi_step=2):
    B = x.shape[0]
    x_flat = x.reshape(B, -1).astype(jnp.float32)
    z_dim = params["emu_w"].shape[1]
    # All eps draws for the forward in one RNG program.
    eps_all = jax.random.normal(key, (n_svi_step + 1, B, z_dim), jnp.float32)
    return _savae_pallas_call(params, x_flat, eps_all, svi_lr, n_svi_step)


# ----------------------------------------------------------------------------
# Pure-JAX reference (autodiff grads, no Pallas) for runtime validation of the
# fused kernel and the hand-derived in-kernel VJP.
# ----------------------------------------------------------------------------
def _hdot(a, b):
    return jnp.dot(a, b, precision=lax.Precision.HIGHEST)


def _clip_grad_norm_ref(g, max_norm=5.0):
    total_norm = jnp.sqrt(jnp.sum(g * g))
    coef = jnp.minimum(1.0, max_norm / (total_norm + 1e-6))
    return g * coef


@functools.partial(jax.jit, static_argnames=("svi_lr", "n_svi_step"))
def savae_forward_ref(params, x, key, svi_lr=0.1, n_svi_step=2):
    B = x.shape[0]
    x_flat = x.reshape(B, -1).astype(jnp.float32)
    D = x_flat.shape[-1]
    z_dim = params["emu_w"].shape[1]
    eps_all = jax.random.normal(key, (n_svi_step + 1, B, z_dim), jnp.float32)

    h = jax.nn.relu(_hdot(x_flat, params["e1_w"]) + params["e1_b"])
    h = jax.nn.relu(_hdot(h, params["e2_w"]) + params["e2_b"])
    mu = _hdot(h, params["emu_w"]) + params["emu_b"]
    lv = _hdot(h, params["elv_w"]) + params["elv_b"]

    def sloss(mu, lv, eps):
        z = mu + eps * jnp.exp(0.5 * lv)
        h1 = jax.nn.relu(_hdot(z, params["d1_w"]) + params["d1_b"])
        h2 = jax.nn.relu(_hdot(h1, params["d2_w"]) + params["d2_b"])
        dh = _hdot(h2, params["dh_w"]) + params["dh_b"]
        dec_mu, dec_lv = dh[:, :D], dh[:, D:]
        logp_x = -0.5 * jnp.sum(
            LOG2PI + dec_lv + (x_flat - dec_mu) ** 2 * jnp.exp(-dec_lv), axis=-1)
        logp_z = -0.5 * jnp.sum(LOG2PI + z * z, axis=-1)
        logq_z = -0.5 * jnp.sum(
            LOG2PI + lv + (z - mu) ** 2 * jnp.exp(-lv), axis=-1)
        return -jnp.mean(logp_x + logp_z - logq_z)

    gfn = jax.grad(sloss, argnums=(0, 1))
    for i in range(n_svi_step):
        gmu, glv = gfn(mu, lv, eps_all[i])
        mu = mu + svi_lr * _clip_grad_norm_ref(gmu, 5.0)
        lv = lv + svi_lr * _clip_grad_norm_ref(glv, 5.0)
    return sloss(mu, lv, eps_all[n_svi_step])


# TODO(synk): write_summary / importance_sample use TensorBoard + 5000-way
# importance sampling; only the forward() (training loss) path is implemented.

if __name__ == "__main__":
    # Small shapes consistent with the module: x_dim = (C, H, W) = (1, 16, 16).
    B = 2
    C, H, W = 1, 16, 16
    image_size = C * H * W
    z_dim = 8
    enc_dim = 32
    dec_dim = 32
    svi_lr = 0.1
    n_svi_step = 2

    key = jax.random.PRNGKey(0)
    k_x, k_params, k_noise = jax.random.split(key, 3)

    x = jax.random.uniform(k_x, (B, C, H, W), jnp.float32)  # NCHW input
    params = init_params(k_params, image_size, z_dim, enc_dim, dec_dim)

    loss = savae_forward(params, x, k_noise, svi_lr=svi_lr, n_svi_step=n_svi_step)
    loss = jax.block_until_ready(loss)
    loss_ref = jax.block_until_ready(
        savae_forward_ref(params, x, k_noise, svi_lr=svi_lr, n_svi_step=n_svi_step))

    assert loss.shape == () and jnp.isfinite(loss), loss
    assert jnp.allclose(loss, loss_ref, rtol=2e-3, atol=2e-3), (loss, loss_ref)
    print("KERNEL_OK")
</pallas_src>

<mosaic_0001>
module attributes {stable_mosaic.version = 11 : i64} {
  func.func @_savae_fused_kernel(%arg0: memref<2x256xf32, #tpu.memory_space<vmem>>, %arg1: memref<3x2x8xf32, #tpu.memory_space<vmem>>, %arg2: memref<256x32xf32, #tpu.memory_space<vmem>>, %arg3: memref<1x32xf32, #tpu.memory_space<vmem>>, %arg4: memref<32x32xf32, #tpu.memory_space<vmem>>, %arg5: memref<1x32xf32, #tpu.memory_space<vmem>>, %arg6: memref<32x8xf32, #tpu.memory_space<vmem>>, %arg7: memref<1x8xf32, #tpu.memory_space<vmem>>, %arg8: memref<32x8xf32, #tpu.memory_space<vmem>>, %arg9: memref<1x8xf32, #tpu.memory_space<vmem>>, %arg10: memref<8x32xf32, #tpu.memory_space<vmem>>, %arg11: memref<1x32xf32, #tpu.memory_space<vmem>>, %arg12: memref<32x32xf32, #tpu.memory_space<vmem>>, %arg13: memref<1x32xf32, #tpu.memory_space<vmem>>, %arg14: memref<32x512xf32, #tpu.memory_space<vmem>>, %arg15: memref<1x512xf32, #tpu.memory_space<vmem>>, %arg16: memref<32x8xf32, #tpu.memory_space<vmem>>, %arg17: memref<32x32xf32, #tpu.memory_space<vmem>>, %arg18: memref<512x32xf32, #tpu.memory_space<vmem>>, %arg19: memref<1x1xf32, #tpu.memory_space<vmem>>) attributes {dimension_semantics = [], scalar_prefetch = 0 : i64, scratch_operands = 0 : i64, tpu.core_type = #tpu.core_type<tc>} {
    %c0 = arith.constant 0 : index
    %c0_0 = arith.constant 0 : index
    %0 = vector.load %arg0[%c0, %c0_0] : memref<2x256xf32, #tpu.memory_space<vmem>>, vector<2x256xf32>
    %c0_1 = arith.constant 0 : index
    %c0_2 = arith.constant 0 : index
    %1 = vector.load %arg10[%c0_1, %c0_2] : memref<8x32xf32, #tpu.memory_space<vmem>>, vector<8x32xf32>
    %c0_3 = arith.constant 0 : index
    %c0_4 = arith.constant 0 : index
    %2 = vector.load %arg11[%c0_3, %c0_4] : memref<1x32xf32, #tpu.memory_space<vmem>>, vector<1x32xf32>
    %c0_5 = arith.constant 0 : index
    %c0_6 = arith.constant 0 : index
    %3 = vector.load %arg12[%c0_5, %c0_6] : memref<32x32xf32, #tpu.memory_space<vmem>>, vector<32x32xf32>
    %c0_7 = arith.constant 0 : index
    %c0_8 = arith.constant 0 : index
    %4 = vector.load %arg13[%c0_7, %c0_8] : memref<1x32xf32, #tpu.memory_space<vmem>>, vector<1x32xf32>
    %c0_9 = arith.constant 0 : index
    %c0_10 = arith.constant 0 : index
    %5 = vector.load %arg14[%c0_9, %c0_10] : memref<32x512xf32, #tpu.memory_space<vmem>>, vector<32x512xf32>
    %c0_11 = arith.constant 0 : index
    %c0_12 = arith.constant 0 : index
    %6 = vector.load %arg15[%c0_11, %c0_12] : memref<1x512xf32, #tpu.memory_space<vmem>>, vector<1x512xf32>
    %c0_13 = arith.constant 0 : index
    %c0_14 = arith.constant 0 : index
    %7 = vector.load %arg16[%c0_13, %c0_14] : memref<32x8xf32, #tpu.memory_space<vmem>>, vector<32x8xf32>
    %c0_15 = arith.constant 0 : index
    %c0_16 = arith.constant 0 : index
    %8 = vector.load %arg17[%c0_15, %c0_16] : memref<32x32xf32, #tpu.memory_space<vmem>>, vector<32x32xf32>
    %c0_17 = arith.constant 0 : index
    %c0_18 = arith.constant 0 : index
    %9 = vector.load %arg18[%c0_17, %c0_18] : memref<512x32xf32, #tpu.memory_space<vmem>>, vector<512x32xf32>
    %c0_19 = arith.constant 0 : index
    %c0_20 = arith.constant 0 : index
    %10 = vector.load %arg2[%c0_19, %c0_20] : memref<256x32xf32, #tpu.memory_space<vmem>>, vector<256x32xf32>
    %cst = arith.constant dense<0.000000e+00> : vector<2x32xf32>
    %11 = tpu.matmul %0, %10, %cst {dimension_numbers = #tpu.dot_dimension_numbers<[1], [0], [0], [1], [0, 0, 1, 1], [], []>} : vector<2x256xf32>, vector<256x32xf32>, vector<2x32xf32> -> vector<2x32xf32>
    %c0_21 = arith.constant 0 : index
    %c0_22 = arith.constant 0 : index
    %12 = vector.load %arg3[%c0_21, %c0_22] : memref<1x32xf32, #tpu.memory_space<vmem>>, vector<1x32xf32>
    %13 = vector.broadcast %12 : vector<1x32xf32> to vector<2x32xf32>
    %14 = arith.addf %11, %13 : vector<2x32xf32>
    %cst_23 = arith.constant 0.000000e+00 : f32
    %15 = vector.broadcast %cst_23 : f32 to vector<2x32xf32>
    %16 = arith.maximumf %14, %15 : vector<2x32xf32>
    %c0_24 = arith.constant 0 : index
    %c0_25 = arith.constant 0 : index
    %17 = vector.load %arg4[%c0_24, %c0_25] : memref<32x32xf32, #tpu.memory_space<vmem>>, vector<32x32xf32>
    %cst_26 = arith.constant dense<0.000000e+00> : vector<2x32xf32>
    %18 = tpu.matmul %16, %17, %cst_26 {dimension_numbers = #tpu.dot_dimension_numbers<[1], [0], [0], [1], [0, 0, 1, 1], [], []>} : vector<2x32xf32>, vector<32x32xf32>, vector<2x32xf32> -> vector<2x32xf32>
    %c0_27 = arith.constant 0 : index
    %c0_28 = arith.constant 0 : index
    %19 = vector.load %arg5[%c0_27, %c0_28] : memref<1x32xf32, #tpu.memory_space<vmem>>, vector<1x32xf32>
    %20 = vector.broadcast %19 : vector<1x32xf32> to vector<2x32xf32>
    %21 = arith.addf %18, %20 : vector<2x32xf32>
    %cst_29 = arith.constant 0.000000e+00 : f32
    %22 = vector.broadcast %cst_29 : f32 to vector<2x32xf32>
    %23 = arith.maximumf %21, %22 : vector<2x32xf32>
    %c0_30 = arith.constant 0 : index
    %c0_31 = arith.constant 0 : index
    %24 = vector.load %arg6[%c0_30, %c0_31] : memref<32x8xf32, #tpu.memory_space<vmem>>, vector<32x8xf32>
    %cst_32 = arith.constant dense<0.000000e+00> : vector<2x8xf32>
    %25 = tpu.matmul %23, %24, %cst_32 {dimension_numbers = #tpu.dot_dimension_numbers<[1], [0], [0], [1], [0, 0, 1, 1], [], []>} : vector<2x32xf32>, vector<32x8xf32>, vector<2x8xf32> -> vector<2x8xf32>
    %c0_33 = arith.constant 0 : index
    %c0_34 = arith.constant 0 : index
    %26 = vector.load %arg7[%c0_33, %c0_34] : memref<1x8xf32, #tpu.memory_space<vmem>>, vector<1x8xf32>
    %27 = vector.broadcast %26 : vector<1x8xf32> to vector<2x8xf32>
    %28 = arith.addf %25, %27 : vector<2x8xf32>
    %c0_35 = arith.constant 0 : index
    %c0_36 = arith.constant 0 : index
    %29 = vector.load %arg8[%c0_35, %c0_36] : memref<32x8xf32, #tpu.memory_space<vmem>>, vector<32x8xf32>
    %cst_37 = arith.constant dense<0.000000e+00> : vector<2x8xf32>
    %30 = tpu.matmul %23, %29, %cst_37 {dimension_numbers = #tpu.dot_dimension_numbers<[1], [0], [0], [1], [0, 0, 1, 1], [], []>} : vector<2x32xf32>, vector<32x8xf32>, vector<2x8xf32> -> vector<2x8xf32>
    %c0_38 = arith.constant 0 : index
    %c0_39 = arith.constant 0 : index
    %31 = vector.load %arg9[%c0_38, %c0_39] : memref<1x8xf32, #tpu.memory_space<vmem>>, vector<1x8xf32>
    %32 = vector.broadcast %31 : vector<1x8xf32> to vector<2x8xf32>
    %33 = arith.addf %30, %32 : vector<2x8xf32>
    %c0_40 = arith.constant 0 : index
    %c0_41 = arith.constant 0 : index
    %c0_42 = arith.constant 0 : index
    %34 = vector.load %arg1[%c0_40, %c0_41, %c0_42] : memref<3x2x8xf32, #tpu.memory_space<vmem>>, vector<1x2x8xf32>
    %35 = vector.shape_cast %34 : vector<1x2x8xf32> to vector<2x8xf32>
    %cst_43 = arith.constant 5.000000e-01 : f32
    %36 = vector.broadcast %cst_43 : f32 to vector<2x8xf32>
    %37 = arith.mulf %36, %33 : vector<2x8xf32>
    %38 = math.exp %37 : vector<2x8xf32>
    %39 = arith.mulf %35, %38 : vector<2x8xf32>
    %40 = arith.addf %28, %39 : vector<2x8xf32>
    %cst_44 = arith.constant dense<0.000000e+00> : vector<2x32xf32>
    %41 = tpu.matmul %40, %1, %cst_44 {dimension_numbers = #tpu.dot_dimension_numbers<[1], [0], [0], [1], [0, 0, 1, 1], [], []>} : vector<2x8xf32>, vector<8x32xf32>, vector<2x32xf32> -> vector<2x32xf32>
    %42 = vector.broadcast %2 : vector<1x32xf32> to vector<2x32xf32>
    %43 = arith.addf %41, %42 : vector<2x32xf32>
    %cst_45 = arith.constant 0.000000e+00 : f32
    %44 = vector.broadcast %cst_45 : f32 to vector<2x32xf32>
    %45 = arith.maximumf %43, %44 : vector<2x32xf32>
    %cst_46 = arith.constant dense<0.000000e+00> : vector<2x32xf32>
    %46 = tpu.matmul %45, %3, %cst_46 {dimension_numbers = #tpu.dot_dimension_numbers<[1], [0], [0], [1], [0, 0, 1, 1], [], []>} : vector<2x32xf32>, vector<32x32xf32>, vector<2x32xf32> -> vector<2x32xf32>
    %47 = vector.broadcast %4 : vector<1x32xf32> to vector<2x32xf32>
    %48 = arith.addf %46, %47 : vector<2x32xf32>
    %cst_47 = arith.constant 0.000000e+00 : f32
    %49 = vector.broadcast %cst_47 : f32 to vector<2x32xf32>
    %50 = arith.maximumf %48, %49 : vector<2x32xf32>
    %cst_48 = arith.constant dense<0.000000e+00> : vector<2x512xf32>
    %51 = tpu.matmul %50, %5, %cst_48 {dimension_numbers = #tpu.dot_dimension_numbers<[1], [0], [0], [1], [0, 0, 1, 1], [], []>} : vector<2x32xf32>, vector<32x512xf32>, vector<2x512xf32> -> vector<2x512xf32>
    %52 = vector.broadcast %6 : vector<1x512xf32> to vector<2x512xf32>
    %53 = arith.addf %51, %52 : vector<2x512xf32>
    %54 = vector.extract_strided_slice %53 {offsets = [0, 0], sizes = [2, 256], strides = [1, 1]} : vector<2x512xf32> to vector<2x256xf32>
    %55 = vector.extract_strided_slice %53 {offsets = [0, 256], sizes = [2, 256], strides = [1, 1]} : vector<2x512xf32> to vector<2x256xf32>
    %cst_49 = arith.constant 0.000000e+00 : f32
    %56 = vector.broadcast %cst_49 : f32 to vector<2x256xf32>
    %57 = arith.subf %56, %55 : vector<2x256xf32>
    %58 = math.exp %57 : vector<2x256xf32>
    %59 = arith.subf %0, %54 : vector<2x256xf32>
    %cst_50 = arith.constant -5.000000e-01 : f32
    %60 = vector.broadcast %cst_50 : f32 to vector<2x256xf32>
    %61 = arith.mulf %60, %59 : vector<2x256xf32>
    %62 = arith.mulf %61, %58 : vector<2x256xf32>
    %cst_51 = arith.constant 5.000000e-01 : f32
    %63 = vector.broadcast %cst_51 : f32 to vector<2x256xf32>
    %64 = arith.mulf %63, %59 : vector<2x256xf32>
    %65 = arith.mulf %64, %59 : vector<2x256xf32>
    %66 = arith.mulf %65, %58 : vector<2x256xf32>
    %cst_52 = arith.constant -5.000000e-01 : f32
    %67 = vector.broadcast %cst_52 : f32 to vector<2x256xf32>
    %68 = arith.addf %67, %66 : vector<2x256xf32>
    %cst_53 = arith.constant -5.000000e-01 : f32
    %69 = vector.broadcast %cst_53 : f32 to vector<2x256xf32>
    %70 = arith.mulf %69, %68 : vector<2x256xf32>
    %71 = tpu.concatenate %62, %70 in 1 : vector<2x256xf32>, vector<2x256xf32> -> vector<2x512xf32>
    %cst_54 = arith.constant dense<0.000000e+00> : vector<2x32xf32>
    %72 = tpu.matmul %71, %9, %cst_54 {dimension_numbers = #tpu.dot_dimension_numbers<[1], [0], [0], [1], [0, 0, 1, 1], [], []>} : vector<2x512xf32>, vector<512x32xf32>, vector<2x32xf32> -> vector<2x32xf32>
    %cst_55 = arith.constant 0.000000e+00 : f32
    %73 = vector.broadcast %cst_55 : f32 to vector<2x32xf32>
    %74 = arith.cmpf ogt, %50, %73 : vector<2x32xf32>
    %cst_56 = arith.constant 0.000000e+00 : f32
    %75 = vector.broadcast %cst_56 : f32 to vector<2x32xf32>
    %76 = arith.select %74, %72, %75 : vector<2x32xi1>, vector<2x32xf32>
    %cst_57 = arith.constant dense<0.000000e+00> : vector<2x32xf32>
    %77 = tpu.matmul %76, %8, %cst_57 {dimension_numbers = #tpu.dot_dimension_numbers<[1], [0], [0], [1], [0, 0, 1, 1], [], []>} : vector<2x32xf32>, vector<32x32xf32>, vector<2x32xf32> -> vector<2x32xf32>
    %cst_58 = arith.constant 0.000000e+00 : f32
    %78 = vector.broadcast %cst_58 : f32 to vector<2x32xf32>
    %79 = arith.cmpf ogt, %45, %78 : vector<2x32xf32>
    %cst_59 = arith.constant 0.000000e+00 : f32
    %80 = vector.broadcast %cst_59 : f32 to vector<2x32xf32>
    %81 = arith.select %79, %77, %80 : vector<2x32xi1>, vector<2x32xf32>
    %cst_60 = arith.constant dense<0.000000e+00> : vector<2x8xf32>
    %82 = tpu.matmul %81, %7, %cst_60 {dimension_numbers = #tpu.dot_dimension_numbers<[1], [0], [0], [1], [0, 0, 1, 1], [], []>} : vector<2x32xf32>, vector<32x8xf32>, vector<2x8xf32> -> vector<2x8xf32>
    %cst_61 = arith.constant 0.000000e+00 : f32
    %83 = vector.broadcast %cst_61 : f32 to vector<2x8xf32>
    %84 = arith.subf %83, %33 : vector<2x8xf32>
    %85 = math.exp %84 : vector<2x8xf32>
    %86 = arith.subf %40, %28 : vector<2x8xf32>
    %cst_62 = arith.constant -5.000000e-01 : f32
    %87 = vector.broadcast %cst_62 : f32 to vector<2x8xf32>
    %88 = arith.mulf %87, %40 : vector<2x8xf32>
    %89 = arith.subf %82, %88 : vector<2x8xf32>
    %cst_63 = arith.constant -5.000000e-01 : f32
    %90 = vector.broadcast %cst_63 : f32 to vector<2x8xf32>
    %91 = arith.mulf %90, %86 : vector<2x8xf32>
    %92 = arith.mulf %91, %85 : vector<2x8xf32>
    %93 = arith.addf %89, %92 : vector<2x8xf32>
    %cst_64 = arith.constant -5.000000e-01 : f32
    %94 = vector.broadcast %cst_64 : f32 to vector<2x8xf32>
    %95 = arith.mulf %94, %86 : vector<2x8xf32>
    %96 = arith.mulf %95, %85 : vector<2x8xf32>
    %97 = arith.subf %93, %96 : vector<2x8xf32>
    %cst_65 = arith.constant 5.000000e-01 : f32
    %98 = vector.broadcast %cst_65 : f32 to vector<2x8xf32>
    %99 = arith.mulf %98, %35 : vector<2x8xf32>
    %100 = arith.mulf %99, %38 : vector<2x8xf32>
    %101 = arith.mulf %93, %100 : vector<2x8xf32>
    %cst_66 = arith.constant 5.000000e-01 : f32
    %102 = vector.broadcast %cst_66 : f32 to vector<2x8xf32>
    %103 = arith.mulf %102, %86 : vector<2x8xf32>
    %104 = arith.mulf %103, %86 : vector<2x8xf32>
    %105 = arith.mulf %104, %85 : vector<2x8xf32>
    %cst_67 = arith.constant 5.000000e-01 : f32
    %106 = vector.broadcast %cst_67 : f32 to vector<2x8xf32>
    %107 = arith.subf %106, %105 : vector<2x8xf32>
    %cst_68 = arith.constant -5.000000e-01 : f32
    %108 = vector.broadcast %cst_68 : f32 to vector<2x8xf32>
    %109 = arith.mulf %108, %107 : vector<2x8xf32>
    %110 = arith.addf %101, %109 : vector<2x8xf32>
    %111 = arith.mulf %97, %97 : vector<2x8xf32>
    %cst_69 = arith.constant dense<0.000000e+00> : vector<2xf32>
    %112 = vector.multi_reduction <add>, %111, %cst_69 [1] : vector<2x8xf32> to vector<2xf32>
    %113 = vector.shape_cast %112 : vector<2xf32> to vector<2x1xf32>
    %cst_70 = arith.constant dense<0.000000e+00> : vector<1xf32>
    %114 = vector.multi_reduction <add>, %113, %cst_70 [0] : vector<2x1xf32> to vector<1xf32>
    %115 = vector.shape_cast %114 : vector<1xf32> to vector<1x1xf32>
    %116 = math.sqrt %115 : vector<1x1xf32>
    %cst_71 = arith.constant 9.99999997E-7 : f32
    %117 = vector.broadcast %cst_71 : f32 to vector<1x1xf32>
    %118 = arith.addf %116, %117 : vector<1x1xf32>
    %cst_72 = arith.constant 5.000000e+00 : f32
    %119 = vector.broadcast %cst_72 : f32 to vector<1x1xf32>
    %120 = arith.divf %119, %118 : vector<1x1xf32>
    %cst_73 = arith.constant 1.000000e+00 : f32
    %121 = vector.broadcast %cst_73 : f32 to vector<1x1xf32>
    %122 = arith.minimumf %121, %120 : vector<1x1xf32>
    %123 = vector.broadcast %122 : vector<1x1xf32> to vector<2x8xf32>
    %124 = arith.mulf %97, %123 : vector<2x8xf32>
    %cst_74 = arith.constant 1.000000e-01 : f32
    %125 = vector.broadcast %cst_74 : f32 to vector<2x8xf32>
    %126 = arith.mulf %125, %124 : vector<2x8xf32>
    %127 = arith.addf %28, %126 : vector<2x8xf32>
    %128 = arith.mulf %110, %110 : vector<2x8xf32>
    %cst_75 = arith.constant dense<0.000000e+00> : vector<2xf32>
    %129 = vector.multi_reduction <add>, %128, %cst_75 [1] : vector<2x8xf32> to vector<2xf32>
    %130 = vector.shape_cast %129 : vector<2xf32> to vector<2x1xf32>
    %cst_76 = arith.constant dense<0.000000e+00> : vector<1xf32>
    %131 = vector.multi_reduction <add>, %130, %cst_76 [0] : vector<2x1xf32> to vector<1xf32>
    %132 = vector.shape_cast %131 : vector<1xf32> to vector<1x1xf32>
    %133 = math.sqrt %132 : vector<1x1xf32>
    %cst_77 = arith.constant 9.99999997E-7 : f32
    %134 = vector.broadcast %cst_77 : f32 to vector<1x1xf32>
    %135 = arith.addf %133, %134 : vector<1x1xf32>
    %cst_78 = arith.constant 5.000000e+00 : f32
    %136 = vector.broadcast %cst_78 : f32 to vector<1x1xf32>
    %137 = arith.divf %136, %135 : vector<1x1xf32>
    %cst_79 = arith.constant 1.000000e+00 : f32
    %138 = vector.broadcast %cst_79 : f32 to vector<1x1xf32>
    %139 = arith.minimumf %138, %137 : vector<1x1xf32>
    %140 = vector.broadcast %139 : vector<1x1xf32> to vector<2x8xf32>
    %141 = arith.mulf %110, %140 : vector<2x8xf32>
    %cst_80 = arith.constant 1.000000e-01 : f32
    %142 = vector.broadcast %cst_80 : f32 to vector<2x8xf32>
    %143 = arith.mulf %142, %141 : vector<2x8xf32>
    %144 = arith.addf %33, %143 : vector<2x8xf32>
    %c1 = arith.constant 1 : index
    %c0_81 = arith.constant 0 : index
    %c0_82 = arith.constant 0 : index
    %145 = vector.load %arg1[%c1, %c0_81, %c0_82] : memref<3x2x8xf32, #tpu.memory_space<vmem>>, vector<1x2x8xf32>
    %146 = vector.shape_cast %145 : vector<1x2x8xf32> to vector<2x8xf32>
    %cst_83 = arith.constant 5.000000e-01 : f32
    %147 = vector.broadcast %cst_83 : f32 to vector<2x8xf32>
    %148 = arith.mulf %147, %144 : vector<2x8xf32>
    %149 = math.exp %148 : vector<2x8xf32>
    %150 = arith.mulf %146, %149 : vector<2x8xf32>
    %151 = arith.addf %127, %150 : vector<2x8xf32>
    %cst_84 = arith.constant dense<0.000000e+00> : vector<2x32xf32>
    %152 = tpu.matmul %151, %1, %cst_84 {dimension_numbers = #tpu.dot_dimension_numbers<[1], [0], [0], [1], [0, 0, 1, 1], [], []>} : vector<2x8xf32>, vector<8x32xf32>, vector<2x32xf32> -> vector<2x32xf32>
    %153 = vector.broadcast %2 : vector<1x32xf32> to vector<2x32xf32>
    %154 = arith.addf %152, %153 : vector<2x32xf32>
    %cst_85 = arith.constant 0.000000e+00 : f32
    %155 = vector.broadcast %cst_85 : f32 to vector<2x32xf32>
    %156 = arith.maximumf %154, %155 : vector<2x32xf32>
    %cst_86 = arith.constant dense<0.000000e+00> : vector<2x32xf32>
    %157 = tpu.matmul %156, %3, %cst_86 {dimension_numbers = #tpu.dot_dimension_numbers<[1], [0], [0], [1], [0, 0, 1, 1], [], []>} : vector<2x32xf32>, vector<32x32xf32>, vector<2x32xf32> -> vector<2x32xf32>
    %158 = vector.broadcast %4 : vector<1x32xf32> to vector<2x32xf32>
    %159 = arith.addf %157, %158 : vector<2x32xf32>
    %cst_87 = arith.constant 0.000000e+00 : f32
    %160 = vector.broadcast %cst_87 : f32 to vector<2x32xf32>
    %161 = arith.maximumf %159, %160 : vector<2x32xf32>
    %cst_88 = arith.constant dense<0.000000e+00> : vector<2x512xf32>
    %162 = tpu.matmul %161, %5, %cst_88 {dimension_numbers = #tpu.dot_dimension_numbers<[1], [0], [0], [1], [0, 0, 1, 1], [], []>} : vector<2x32xf32>, vector<32x512xf32>, vector<2x512xf32> -> vector<2x512xf32>
    %163 = vector.broadcast %6 : vector<1x512xf32> to vector<2x512xf32>
    %164 = arith.addf %162, %163 : vector<2x512xf32>
    %165 = vector.extract_strided_slice %164 {offsets = [0, 0], sizes = [2, 256], strides = [1, 1]} : vector<2x512xf32> to vector<2x256xf32>
    %166 = vector.extract_strided_slice %164 {offsets = [0, 256], sizes = [2, 256], strides = [1, 1]} : vector<2x512xf32> to vector<2x256xf32>
    %cst_89 = arith.constant 0.000000e+00 : f32
    %167 = vector.broadcast %cst_89 : f32 to vector<2x256xf32>
    %168 = arith.subf %167, %166 : vector<2x256xf32>
    %169 = math.exp %168 : vector<2x256xf32>
    %170 = arith.subf %0, %165 : vector<2x256xf32>
    %cst_90 = arith.constant -5.000000e-01 : f32
    %171 = vector.broadcast %cst_90 : f32 to vector<2x256xf32>
    %172 = arith.mulf %171, %170 : vector<2x256xf32>
    %173 = arith.mulf %172, %169 : vector<2x256xf32>
    %cst_91 = arith.constant 5.000000e-01 : f32
    %174 = vector.broadcast %cst_91 : f32 to vector<2x256xf32>
    %175 = arith.mulf %174, %170 : vector<2x256xf32>
    %176 = arith.mulf %175, %170 : vector<2x256xf32>
    %177 = arith.mulf %176, %169 : vector<2x256xf32>
    %cst_92 = arith.constant -5.000000e-01 : f32
    %178 = vector.broadcast %cst_92 : f32 to vector<2x256xf32>
    %179 = arith.addf %178, %177 : vector<2x256xf32>
    %cst_93 = arith.constant -5.000000e-01 : f32
    %180 = vector.broadcast %cst_93 : f32 to vector<2x256xf32>
    %181 = arith.mulf %180, %179 : vector<2x256xf32>
    %182 = tpu.concatenate %173, %181 in 1 : vector<2x256xf32>, vector<2x256xf32> -> vector<2x512xf32>
    %cst_94 = arith.constant dense<0.000000e+00> : vector<2x32xf32>
    %183 = tpu.matmul %182, %9, %cst_94 {dimension_numbers = #tpu.dot_dimension_numbers<[1], [0], [0], [1], [0, 0, 1, 1], [], []>} : vector<2x512xf32>, vector<512x32xf32>, vector<2x32xf32> -> vector<2x32xf32>
    %cst_95 = arith.constant 0.000000e+00 : f32
    %184 = vector.broadcast %cst_95 : f32 to vector<2x32xf32>
    %185 = arith.cmpf ogt, %161, %184 : vector<2x32xf32>
    %cst_96 = arith.constant 0.000000e+00 : f32
    %186 = vector.broadcast %cst_96 : f32 to vector<2x32xf32>
    %187 = arith.select %185, %183, %186 : vector<2x32xi1>, vector<2x32xf32>
    %cst_97 = arith.constant dense<0.000000e+00> : vector<2x32xf32>
    %188 = tpu.matmul %187, %8, %cst_97 {dimension_numbers = #tpu.dot_dimension_numbers<[1], [0], [0], [1], [0, 0, 1, 1], [], []>} : vector<2x32xf32>, vector<32x32xf32>, vector<2x32xf32> -> vector<2x32xf32>
    %cst_98 = arith.constant 0.000000e+00 : f32
    %189 = vector.broadcast %cst_98 : f32 to vector<2x32xf32>
    %190 = arith.cmpf ogt, %156, %189 : vector<2x32xf32>
    %cst_99 = arith.constant 0.000000e+00 : f32
    %191 = vector.broadcast %cst_99 : f32 to vector<2x32xf32>
    %192 = arith.select %190, %188, %191 : vector<2x32xi1>, vector<2x32xf32>
    %cst_100 = arith.constant dense<0.000000e+00> : vector<2x8xf32>
    %193 = tpu.matmul %192, %7, %cst_100 {dimension_numbers = #tpu.dot_dimension_numbers<[1], [0], [0], [1], [0, 0, 1, 1], [], []>} : vector<2x32xf32>, vector<32x8xf32>, vector<2x8xf32> -> vector<2x8xf32>
    %cst_101 = arith.constant 0.000000e+00 : f32
    %194 = vector.broadcast %cst_101 : f32 to vector<2x8xf32>
    %195 = arith.subf %194, %144 : vector<2x8xf32>
    %196 = math.exp %195 : vector<2x8xf32>
    %197 = arith.subf %151, %127 : vector<2x8xf32>
    %cst_102 = arith.constant -5.000000e-01 : f32
    %198 = vector.broadcast %cst_102 : f32 to vector<2x8xf32>
    %199 = arith.mulf %198, %151 : vector<2x8xf32>
    %200 = arith.subf %193, %199 : vector<2x8xf32>
    %cst_103 = arith.constant -5.000000e-01 : f32
    %201 = vector.broadcast %cst_103 : f32 to vector<2x8xf32>
    %202 = arith.mulf %201, %197 : vector<2x8xf32>
    %203 = arith.mulf %202, %196 : vector<2x8xf32>
    %204 = arith.addf %200, %203 : vector<2x8xf32>
    %cst_104 = arith.constant -5.000000e-01 : f32
    %205 = vector.broadcast %cst_104 : f32 to vector<2x8xf32>
    %206 = arith.mulf %205, %197 : vector<2x8xf32>
    %207 = arith.mulf %206, %196 : vector<2x8xf32>
    %208 = arith.subf %204, %207 : vector<2x8xf32>
    %cst_105 = arith.constant 5.000000e-01 : f32
    %209 = vector.broadcast %cst_105 : f32 to vector<2x8xf32>
    %210 = arith.mulf %209, %146 : vector<2x8xf32>
    %211 = arith.mulf %210, %149 : vector<2x8xf32>
    %212 = arith.mulf %204, %211 : vector<2x8xf32>
    %cst_106 = arith.constant 5.000000e-01 : f32
    %213 = vector.broadcast %cst_106 : f32 to vector<2x8xf32>
    %214 = arith.mulf %213, %197 : vector<2x8xf32>
    %215 = arith.mulf %214, %197 : vector<2x8xf32>
    %216 = arith.mulf %215, %196 : vector<2x8xf32>
    %cst_107 = arith.constant 5.000000e-01 : f32
    %217 = vector.broadcast %cst_107 : f32 to vector<2x8xf32>
    %218 = arith.subf %217, %216 : vector<2x8xf32>
    %cst_108 = arith.constant -5.000000e-01 : f32
    %219 = vector.broadcast %cst_108 : f32 to vector<2x8xf32>
    %220 = arith.mulf %219, %218 : vector<2x8xf32>
    %221 = arith.addf %212, %220 : vector<2x8xf32>
    %222 = arith.mulf %208, %208 : vector<2x8xf32>
    %cst_109 = arith.constant dense<0.000000e+00> : vector<2xf32>
    %223 = vector.multi_reduction <add>, %222, %cst_109 [1] : vector<2x8xf32> to vector<2xf32>
    %224 = vector.shape_cast %223 : vector<2xf32> to vector<2x1xf32>
    %cst_110 = arith.constant dense<0.000000e+00> : vector<1xf32>
    %225 = vector.multi_reduction <add>, %224, %cst_110 [0] : vector<2x1xf32> to vector<1xf32>
    %226 = vector.shape_cast %225 : vector<1xf32> to vector<1x1xf32>
    %227 = math.sqrt %226 : vector<1x1xf32>
    %cst_111 = arith.constant 9.99999997E-7 : f32
    %228 = vector.broadcast %cst_111 : f32 to vector<1x1xf32>
    %229 = arith.addf %227, %228 : vector<1x1xf32>
    %cst_112 = arith.constant 5.000000e+00 : f32
    %230 = vector.broadcast %cst_112 : f32 to vector<1x1xf32>
    %231 = arith.divf %230, %229 : vector<1x1xf32>
    %cst_113 = arith.constant 1.000000e+00 : f32
    %232 = vector.broadcast %cst_113 : f32 to vector<1x1xf32>
    %233 = arith.minimumf %232, %231 : vector<1x1xf32>
    %234 = vector.broadcast %233 : vector<1x1xf32> to vector<2x8xf32>
    %235 = arith.mulf %208, %234 : vector<2x8xf32>
    %cst_114 = arith.constant 1.000000e-01 : f32
    %236 = vector.broadcast %cst_114 : f32 to vector<2x8xf32>
    %237 = arith.mulf %236, %235 : vector<2x8xf32>
    %238 = arith.addf %127, %237 : vector<2x8xf32>
    %239 = arith.mulf %221, %221 : vector<2x8xf32>
    %cst_115 = arith.constant dense<0.000000e+00> : vector<2xf32>
    %240 = vector.multi_reduction <add>, %239, %cst_115 [1] : vector<2x8xf32> to vector<2xf32>
    %241 = vector.shape_cast %240 : vector<2xf32> to vector<2x1xf32>
    %cst_116 = arith.constant dense<0.000000e+00> : vector<1xf32>
    %242 = vector.multi_reduction <add>, %241, %cst_116 [0] : vector<2x1xf32> to vector<1xf32>
    %243 = vector.shape_cast %242 : vector<1xf32> to vector<1x1xf32>
    %244 = math.sqrt %243 : vector<1x1xf32>
    %cst_117 = arith.constant 9.99999997E-7 : f32
    %245 = vector.broadcast %cst_117 : f32 to vector<1x1xf32>
    %246 = arith.addf %244, %245 : vector<1x1xf32>
    %cst_118 = arith.constant 5.000000e+00 : f32
    %247 = vector.broadcast %cst_118 : f32 to vector<1x1xf32>
    %248 = arith.divf %247, %246 : vector<1x1xf32>
    %cst_119 = arith.constant 1.000000e+00 : f32
    %249 = vector.broadcast %cst_119 : f32 to vector<1x1xf32>
    %250 = arith.minimumf %249, %248 : vector<1x1xf32>
    %251 = vector.broadcast %250 : vector<1x1xf32> to vector<2x8xf32>
    %252 = arith.mulf %221, %251 : vector<2x8xf32>
    %cst_120 = arith.constant 1.000000e-01 : f32
    %253 = vector.broadcast %cst_120 : f32 to vector<2x8xf32>
    %254 = arith.mulf %253, %252 : vector<2x8xf32>
    %255 = arith.addf %144, %254 : vector<2x8xf32>
    %c2 = arith.constant 2 : index
    %c0_121 = arith.constant 0 : index
    %c0_122 = arith.constant 0 : index
    %256 = vector.load %arg1[%c2, %c0_121, %c0_122] : memref<3x2x8xf32, #tpu.memory_space<vmem>>, vector<1x2x8xf32>
    %257 = vector.shape_cast %256 : vector<1x2x8xf32> to vector<2x8xf32>
    %cst_123 = arith.constant 5.000000e-01 : f32
    %258 = vector.broadcast %cst_123 : f32 to vector<2x8xf32>
    %259 = arith.mulf %258, %255 : vector<2x8xf32>
    %260 = math.exp %259 : vector<2x8xf32>
    %261 = arith.mulf %257, %260 : vector<2x8xf32>
    %262 = arith.addf %238, %261 : vector<2x8xf32>
    %cst_124 = arith.constant dense<0.000000e+00> : vector<2x32xf32>
    %263 = tpu.matmul %262, %1, %cst_124 {dimension_numbers = #tpu.dot_dimension_numbers<[1], [0], [0], [1], [0, 0, 1, 1], [], []>} : vector<2x8xf32>, vector<8x32xf32>, vector<2x32xf32> -> vector<2x32xf32>
    %264 = vector.broadcast %2 : vector<1x32xf32> to vector<2x32xf32>
    %265 = arith.addf %263, %264 : vector<2x32xf32>
    %cst_125 = arith.constant 0.000000e+00 : f32
    %266 = vector.broadcast %cst_125 : f32 to vector<2x32xf32>
    %267 = arith.maximumf %265, %266 : vector<2x32xf32>
    %cst_126 = arith.constant dense<0.000000e+00> : vector<2x32xf32>
    %268 = tpu.matmul %267, %3, %cst_126 {dimension_numbers = #tpu.dot_dimension_numbers<[1], [0], [0], [1], [0, 0, 1, 1], [], []>} : vector<2x32xf32>, vector<32x32xf32>, vector<2x32xf32> -> vector<2x32xf32>
    %269 = vector.broadcast %4 : vector<1x32xf32> to vector<2x32xf32>
    %270 = arith.addf %268, %269 : vector<2x32xf32>
    %cst_127 = arith.constant 0.000000e+00 : f32
    %271 = vector.broadcast %cst_127 : f32 to vector<2x32xf32>
    %272 = arith.maximumf %270, %271 : vector<2x32xf32>
    %cst_128 = arith.constant dense<0.000000e+00> : vector<2x512xf32>
    %273 = tpu.matmul %272, %5, %cst_128 {dimension_numbers = #tpu.dot_dimension_numbers<[1], [0], [0], [1], [0, 0, 1, 1], [], []>} : vector<2x32xf32>, vector<32x512xf32>, vector<2x512xf32> -> vector<2x512xf32>
    %274 = vector.broadcast %6 : vector<1x512xf32> to vector<2x512xf32>
    %275 = arith.addf %273, %274 : vector<2x512xf32>
    %276 = vector.extract_strided_slice %275 {offsets = [0, 0], sizes = [2, 256], strides = [1, 1]} : vector<2x512xf32> to vector<2x256xf32>
    %277 = vector.extract_strided_slice %275 {offsets = [0, 256], sizes = [2, 256], strides = [1, 1]} : vector<2x512xf32> to vector<2x256xf32>
    %cst_129 = arith.constant 1.83787704 : f32
    %278 = vector.broadcast %cst_129 : f32 to vector<2x256xf32>
    %279 = arith.addf %278, %277 : vector<2x256xf32>
    %280 = arith.subf %0, %276 : vector<2x256xf32>
    %281 = arith.mulf %280, %280 : vector<2x256xf32>
    %cst_130 = arith.constant 0.000000e+00 : f32
    %282 = vector.broadcast %cst_130 : f32 to vector<2x256xf32>
    %283 = arith.subf %282, %277 : vector<2x256xf32>
    %284 = math.exp %283 : vector<2x256xf32>
    %285 = arith.mulf %281, %284 : vector<2x256xf32>
    %286 = arith.addf %279, %285 : vector<2x256xf32>
    %cst_131 = arith.constant dense<0.000000e+00> : vector<2xf32>
    %287 = vector.multi_reduction <add>, %286, %cst_131 [1] : vector<2x256xf32> to vector<2xf32>
    %288 = vector.shape_cast %287 : vector<2xf32> to vector<2x1xf32>
    %cst_132 = arith.constant -5.000000e-01 : f32
    %289 = vector.broadcast %cst_132 : f32 to vector<2x1xf32>
    %290 = arith.mulf %289, %288 : vector<2x1xf32>
    %291 = arith.mulf %262, %262 : vector<2x8xf32>
    %cst_133 = arith.constant 1.83787704 : f32
    %292 = vector.broadcast %cst_133 : f32 to vector<2x8xf32>
    %293 = arith.addf %292, %291 : vector<2x8xf32>
    %cst_134 = arith.constant dense<0.000000e+00> : vector<2xf32>
    %294 = vector.multi_reduction <add>, %293, %cst_134 [1] : vector<2x8xf32> to vector<2xf32>
    %295 = vector.shape_cast %294 : vector<2xf32> to vector<2x1xf32>
    %cst_135 = arith.constant -5.000000e-01 : f32
    %296 = vector.broadcast %cst_135 : f32 to vector<2x1xf32>
    %297 = arith.mulf %296, %295 : vector<2x1xf32>
    %cst_136 = arith.constant 1.83787704 : f32
    %298 = vector.broadcast %cst_136 : f32 to vector<2x8xf32>
    %299 = arith.addf %298, %255 : vector<2x8xf32>
    %300 = arith.subf %262, %238 : vector<2x8xf32>
    %301 = arith.mulf %300, %300 : vector<2x8xf32>
    %cst_137 = arith.constant 0.000000e+00 : f32
    %302 = vector.broadcast %cst_137 : f32 to vector<2x8xf32>
    %303 = arith.subf %302, %255 : vector<2x8xf32>
    %304 = math.exp %303 : vector<2x8xf32>
    %305 = arith.mulf %301, %304 : vector<2x8xf32>
    %306 = arith.addf %299, %305 : vector<2x8xf32>
    %cst_138 = arith.constant dense<0.000000e+00> : vector<2xf32>
    %307 = vector.multi_reduction <add>, %306, %cst_138 [1] : vector<2x8xf32> to vector<2xf32>
    %308 = vector.shape_cast %307 : vector<2xf32> to vector<2x1xf32>
    %cst_139 = arith.constant -5.000000e-01 : f32
    %309 = vector.broadcast %cst_139 : f32 to vector<2x1xf32>
    %310 = arith.mulf %309, %308 : vector<2x1xf32>
    %311 = arith.addf %290, %297 : vector<2x1xf32>
    %312 = arith.subf %311, %310 : vector<2x1xf32>
    %cst_140 = arith.constant dense<0.000000e+00> : vector<1xf32>
    %313 = vector.multi_reduction <add>, %312, %cst_140 [0] : vector<2x1xf32> to vector<1xf32>
    %314 = vector.shape_cast %313 : vector<1xf32> to vector<1x1xf32>
    %cst_141 = arith.constant 2.000000e+00 : f32
    %315 = vector.broadcast %cst_141 : f32 to vector<1x1xf32>
    %316 = arith.divf %314, %315 : vector<1x1xf32>
    %cst_142 = arith.constant 0.000000e+00 : f32
    %317 = vector.broadcast %cst_142 : f32 to vector<1x1xf32>
    %318 = arith.subf %317, %316 : vector<1x1xf32>
    %c0_143 = arith.constant 0 : index
    %c0_144 = arith.constant 0 : index
    %319 = vector.load %arg19[%c0_143, %c0_144] : memref<1x1xf32, #tpu.memory_space<vmem>>, vector<1x1xf32>
    tpu.vector_store %arg19[%c0_143, %c0_144], %318 {strides = array<i32>} : memref<1x1xf32, #tpu.memory_space<vmem>>, vector<1x1xf32>,
    return
  }
}

</mosaic_0001>

<llo_original>
// kernel: savae_forward.1
$region0: #{savae_forward.1}
  #allocation0 [shape = 'u32[]', space=smem, size = 0x4, offset = 0x4, fixed_abs, tag = 'smem constant byte address 0x4 - core index']
  #allocation1 [shape = 'u32[144,128]{1,0:T(1,128)}', space=vmem, size = 0x12000, scoped, tag = 'internal scratch']
  %s0 = inlined_call_operand.vmem [shape: f32[2,256], index: 0, kind: input, shape index: {}]
  %s1 = inlined_call_operand.vmem [shape: f32[3,2,8], index: 1, kind: input, shape index: {}]
  %s2 = inlined_call_operand.vmem [shape: f32[256,32], index: 2, kind: input, shape index: {}]
  %s3 = inlined_call_operand.vmem [shape: f32[1,32], index: 3, kind: input, shape index: {}]
  %s4 = inlined_call_operand.vmem [shape: f32[32,32], index: 4, kind: input, shape index: {}]
  %s5 = inlined_call_operand.vmem [shape: f32[1,32], index: 5, kind: input, shape index: {}]
  %s6 = inlined_call_operand.vmem [shape: f32[32,8], index: 6, kind: input, shape index: {}]
  %s7 = inlined_call_operand.vmem [shape: f32[1,8], index: 7, kind: input, shape index: {}]
  %s8 = inlined_call_operand.vmem [shape: f32[32,8], index: 8, kind: input, shape index: {}]
  %s9 = inlined_call_operand.vmem [shape: f32[1,8], index: 9, kind: input, shape index: {}]
  %s10 = inlined_call_operand.vmem [shape: f32[8,32], index: 10, kind: input, shape index: {}]
  %s11 = inlined_call_operand.vmem [shape: f32[1,32], index: 11, kind: input, shape index: {}]
  %s12 = inlined_call_operand.vmem [shape: f32[32,32], index: 12, kind: input, shape index: {}]
  %s13 = inlined_call_operand.vmem [shape: f32[1,32], index: 13, kind: input, shape index: {}]
  %s14 = inlined_call_operand.vmem [shape: f32[32,512], index: 14, kind: input, shape index: {}]
  %s15 = inlined_call_operand.vmem [shape: f32[1,512], index: 15, kind: input, shape index: {}]
  %s16 = inlined_call_operand.vmem [shape: f32[32,8], index: 16, kind: input, shape index: {}]
  %s17 = inlined_call_operand.vmem [shape: f32[32,32], index: 17, kind: input, shape index: {}]
  %s18 = inlined_call_operand.vmem [shape: f32[512,32], index: 18, kind: input, shape index: {}]
  %s19 = inlined_call_operand.hbm [shape: f32[1,1], index: 19, kind: output, shape index: {}]
  %s20 = sld [smem:[#allocation0]]
  $region86: #{savae_forward.1} parent=0
    _
  %s22 = ssub.s32 1, %s20
  %s23 = scalar_select 0, %s22, %s20
  $region1: #{savae_forward.1} parent=0
    #allocation2 [shape = 'u8[512]{0}', space=vmem, size = 0x400, scoped, tag = 'output window, operand 0, single buffered']
    #allocation3 [shape = 's32[1]{0}', space=sflag, size = 0x4, scoped, tag = 'scoped memory for savae_forward.1']
    %24 = vsyncpa [#allocation3], 0
    // Predicated region
    $region2: #{savae_forward.1} parent=1 // pred_check
      _
    $region3: #{savae_forward.1} parent=1 // pred_check_branch
      %26 = sbr.rel (0) target = $region5
    $region4: #{savae_forward.1} parent=1 // pred_region
      _
    $region5: #{savae_forward.1} parent=1 // pred_fallthru
      _
    // Predicated region
    $region6: #{savae_forward.1} parent=1 // pred_check
      _
    $region7: #{savae_forward.1} parent=1 // pred_check_branch
      %28 = sbr.rel (0) target = $region9
    $region8: #{savae_forward.1} parent=1 // pred_region
      _
    $region9: #{savae_forward.1} parent=1 // pred_fallthru
      _
    // Predicated region
    $region10: #{savae_forward.1} parent=1 // pred_check
      _
    $region11: #{savae_forward.1} parent=1 // pred_check_branch
      %30 = sbr.rel (0) target = $region13
    $region12: #{savae_forward.1} parent=1 // pred_region
      _
    $region13: #{savae_forward.1} parent=1 // pred_fallthru
      _
    // Predicated region
    $region14: #{savae_forward.1} parent=1 // pred_check
      _
    $region15: #{savae_forward.1} parent=1 // pred_check_branch
      %32 = sbr.rel (0) target = $region17
    $region16: #{savae_forward.1} parent=1 // pred_region
      _
    $region17: #{savae_forward.1} parent=1 // pred_fallthru
      _
    // Predicated region
    $region18: #{savae_forward.1} parent=1 // pred_check
      _
    $region19: #{savae_forward.1} parent=1 // pred_check_branch
      %34 = sbr.rel (0) target = $region21
    $region20: #{savae_forward.1} parent=1 // pred_region
      _
    $region21: #{savae_forward.1} parent=1 // pred_fallthru
      _
    // Predicated region
    $region22: #{savae_forward.1} parent=1 // pred_check
      _
    $region23: #{savae_forward.1} parent=1 // pred_check_branch
      %36 = sbr.rel (0) target = $region25
    $region24: #{savae_forward.1} parent=1 // pred_region
      _
    $region25: #{savae_forward.1} parent=1 // pred_fallthru
      _
    // Predicated region
    $region26: #{savae_forward.1} parent=1 // pred_check
      _
    $region27: #{savae_forward.1} parent=1 // pred_check_branch
      %38 = sbr.rel (0) target = $region29
    $region28: #{savae_forward.1} parent=1 // pred_region
      _
    $region29: #{savae_forward.1} parent=1 // pred_fallthru
      _
    // Predicated region
    $region30: #{savae_forward.1} parent=1 // pred_check
      _
    $region31: #{savae_forward.1} parent=1 // pred_check_branch
      %40 = sbr.rel (0) target = $region33
    $region32: #{savae_forward.1} parent=1 // pred_region
      _
    $region33: #{savae_forward.1} parent=1 // pred_fallthru
      _
    // Predicated region
    $region34: #{savae_forward.1} parent=1 // pred_check
      _
    $region35: #{savae_forward.1} parent=1 // pred_check_branch
      %42 = sbr.rel (0) target = $region37
    $region36: #{savae_forward.1} parent=1 // pred_region
      _
    $region37: #{savae_forward.1} parent=1 // pred_fallthru
      _
    // Predicated region
    $region38: #{savae_forward.1} parent=1 // pred_check
      _
    $region39: #{savae_forward.1} parent=1 // pred_check_branch
      %44 = sbr.rel (0) target = $region41
    $region40: #{savae_forward.1} parent=1 // pred_region
      _
    $region41: #{savae_forward.1} parent=1 // pred_fallthru
      _
    // Predicated region
    $region42: #{savae_forward.1} parent=1 // pred_check
      _
    $region43: #{savae_forward.1} parent=1 // pred_check_branch
      %46 = sbr.rel (0) target = $region45
    $region44: #{savae_forward.1} parent=1 // pred_region
      _
    $region45: #{savae_forward.1} parent=1 // pred_fallthru
      _
    // Predicated region
    $region46: #{savae_forward.1} parent=1 // pred_check
      _
    $region47: #{savae_forward.1} parent=1 // pred_check_branch
      %48 = sbr.rel (0) target = $region49
    $region48: #{savae_forward.1} parent=1 // pred_region
      _
    $region49: #{savae_forward.1} parent=1 // pred_fallthru
      _
    // Predicated region
    $region50: #{savae_forward.1} parent=1 // pred_check
      _
    $region51: #{savae_forward.1} parent=1 // pred_check_branch
      %50 = sbr.rel (0) target = $region53
    $region52: #{savae_forward.1} parent=1 // pred_region
      _
    $region53: #{savae_forward.1} parent=1 // pred_fallthru
      _
    // Predicated region
    $region54: #{savae_forward.1} parent=1 // pred_check
      _
    $region55: #{savae_forward.1} parent=1 // pred_check_branch
      %52 = sbr.rel (0) target = $region57
    $region56: #{savae_forward.1} parent=1 // pred_region
      _
    $region57: #{savae_forward.1} parent=1 // pred_fallthru
      _
    // Predicated region
    $region58: #{savae_forward.1} parent=1 // pred_check
      _
    $region59: #{savae_forward.1} parent=1 // pred_check_branch
      %54 = sbr.rel (0) target = $region61
    $region60: #{savae_forward.1} parent=1 // pred_region
      _
    $region61: #{savae_forward.1} parent=1 // pred_fallthru
      _
    // Predicated region
    $region62: #{savae_forward.1} parent=1 // pred_check
      _
    $region63: #{savae_forward.1} parent=1 // pred_check_branch
      %56 = sbr.rel (0) target = $region65
    $region64: #{savae_forward.1} parent=1 // pred_region
      _
    $region65: #{savae_forward.1} parent=1 // pred_fallthru
      _
    // Predicated region
    $region66: #{savae_forward.1} parent=1 // pred_check
      _
    $region67: #{savae_forward.1} parent=1 // pred_check_branch
      %58 = sbr.rel (0) target = $region69
    $region68: #{savae_forward.1} parent=1 // pred_region
      _
    $region69: #{savae_forward.1} parent=1 // pred_fallthru
      _
    // Predicated region
    $region70: #{savae_forward.1} parent=1 // pred_check
      _
    $region71: #{savae_forward.1} parent=1 // pred_check_branch
      %60 = sbr.rel (0) target = $region73
    $region72: #{savae_forward.1} parent=1 // pred_region
      _
    $region73: #{savae_forward.1} parent=1 // pred_fallthru
      _
    // Predicated region
    $region74: #{savae_forward.1} parent=1 // pred_check
      _
    $region75: #{savae_forward.1} parent=1 // pred_check_branch
      %62 = sbr.rel (0) target = $region77
    $region76: #{savae_forward.1} parent=1 // pred_region
      _
    $region77: #{savae_forward.1} parent=1 // pred_fallthru
      _
    %v63 = vld [vmem:[%s0] sm:$0xf]
    %v64 = vld [vmem:[%s10] sm:$0xff]
    %v65 = vld [vmem:[%s11] sm:$0x1]
    %v66 = vld [vmem:[%s12] sm:$0xff]
    %v67 = vld [vmem:[%s12 + $0x8] sm:$0xff]
    %v68 = vld [vmem:[%s12 + $0x10] sm:$0xff]
    %v69 = vld [vmem:[%s12 + $0x18] sm:$0xff]
    %v70 = vld [vmem:[%s13] sm:$0x1]
    %v71 = vld [vmem:[%s14] sm:$0xff]
    %v72 = vld [vmem:[%s14 + $0x8] sm:$0xff]
    %v73 = vld [vmem:[%s14 + $0x10] sm:$0xff]
    %v74 = vld [vmem:[%s14 + $0x18] sm:$0xff]
    %v75 = vld [vmem:[%s14 + $0x20] sm:$0xff]
    %v76 = vld [vmem:[%s14 + $0x28] sm:$0xff]
    %v77 = vld [vmem:[%s14 + $0x30] sm:$0xff]
    %v78 = vld [vmem:[%s14 + $0x38] sm:$0xff]
    %v79 = vld [vmem:[%s14 + $0x40] sm:$0xff]
    %v80 = vld [vmem:[%s14 + $0x48] sm:$0xff]
    %v81 = vld [vmem:[%s14 + $0x50] sm:$0xff]
    %v82 = vld [vmem:[%s14 + $0x58] sm:$0xff]
    %v83 = vld [vmem:[%s14 + $0x60] sm:$0xff]
    %v84 = vld [vmem:[%s14 + $0x68] sm:$0xff]
    %v85 = vld [vmem:[%s14 + $0x70] sm:$0xff]
    %v86 = vld [vmem:[%s14 + $0x78] sm:$0xff]
    %v87 = vld [vmem:[%s15] sm:$0xf]
    %v88 = vld [vmem:[%s16] sm:$0xff]
    %v89 = vld [vmem:[%s16 + $0x8] sm:$0xff]
    %v90 = vld [vmem:[%s16 + $0x10] sm:$0xff]
    %v91 = vld [vmem:[%s16 + $0x18] sm:$0xff]
    %v92 = vld [vmem:[%s17] sm:$0xff]
    %v93 = vld [vmem:[%s17 + $0x8] sm:$0xff]
    %v94 = vld [vmem:[%s17 + $0x10] sm:$0xff]
    %v95 = vld [vmem:[%s17 + $0x18] sm:$0xff]
    %v96 = vld [vmem:[%s18] sm:$0xff]
    %v97 = vld [vmem:[%s18 + $0x8] sm:$0xff]
    %v98 = vld [vmem:[%s18 + $0x10] sm:$0xff]
    %v99 = vld [vmem:[%s18 + $0x18] sm:$0xff]
    %v100 = vld [vmem:[%s18 + $0x20] sm:$0xff]
    %v101 = vld [vmem:[%s18 + $0x28] sm:$0xff]
    %v102 = vld [vmem:[%s18 + $0x30] sm:$0xff]
    %v103 = vld [vmem:[%s18 + $0x38] sm:$0xff]
    %v104 = vld [vmem:[%s18 + $0x40] sm:$0xff]
    %v105 = vld [vmem:[%s18 + $0x48] sm:$0xff]
    %v106 = vld [vmem:[%s18 + $0x50] sm:$0xff]
    %v107 = vld [vmem:[%s18 + $0x58] sm:$0xff]
    %v108 = vld [vmem:[%s18 + $0x60] sm:$0xff]
    %v109 = vld [vmem:[%s18 + $0x68] sm:$0xff]
    %v110 = vld [vmem:[%s18 + $0x70] sm:$0xff]
    %v111 = vld [vmem:[%s18 + $0x78] sm:$0xff]
    %v112 = vld [vmem:[%s18 + $0x80] sm:$0xff]
    %v113 = vld [vmem:[%s18 + $0x88] sm:$0xff]
    %v114 = vld [vmem:[%s18 + $0x90] sm:$0xff]
    %v115 = vld [vmem:[%s18 + $0x98] sm:$0xff]
    %v116 = vld [vmem:[%s18 + $0xa0] sm:$0xff]
    %v117 = vld [vmem:[%s18 + $0xa8] sm:$0xff]
    %v118 = vld [vmem:[%s18 + $0xb0] sm:$0xff]
    %v119 = vld [vmem:[%s18 + $0xb8] sm:$0xff]
    %v120 = vld [vmem:[%s18 + $0xc0] sm:$0xff]
    %v121 = vld [vmem:[%s18 + $0xc8] sm:$0xff]
    %v122 = vld [vmem:[%s18 + $0xd0] sm:$0xff]
    %v123 = vld [vmem:[%s18 + $0xd8] sm:$0xff]
    %v124 = vld [vmem:[%s18 + $0xe0] sm:$0xff]
    %v125 = vld [vmem:[%s18 + $0xe8] sm:$0xff]
    %v126 = vld [vmem:[%s18 + $0xf0] sm:$0xff]
    %v127 = vld [vmem:[%s18 + $0xf8] sm:$0xff]
    %v128 = vld [vmem:[%s18 + $0x100] sm:$0xff]
    %v129 = vld [vmem:[%s18 + $0x108] sm:$0xff]
    %v130 = vld [vmem:[%s18 + $0x110] sm:$0xff]
    %v131 = vld [vmem:[%s18 + $0x118] sm:$0xff]
    %v132 = vld [vmem:[%s18 + $0x120] sm:$0xff]
    %v133 = vld [vmem:[%s18 + $0x128] sm:$0xff]
    %v134 = vld [vmem:[%s18 + $0x130] sm:$0xff]
    %v135 = vld [vmem:[%s18 + $0x138] sm:$0xff]
    %v136 = vld [vmem:[%s18 + $0x140] sm:$0xff]
    %v137 = vld [vmem:[%s18 + $0x148] sm:$0xff]
    %v138 = vld [vmem:[%s18 + $0x150] sm:$0xff]
    %v139 = vld [vmem:[%s18 + $0x158] sm:$0xff]
    %v140 = vld [vmem:[%s18 + $0x160] sm:$0xff]
    %v141 = vld [vmem:[%s18 + $0x168] sm:$0xff]
    %v142 = vld [vmem:[%s18 + $0x170] sm:$0xff]
    %v143 = vld [vmem:[%s18 + $0x178] sm:$0xff]
    %v144 = vld [vmem:[%s18 + $0x180] sm:$0xff]
    %v145 = vld [vmem:[%s18 + $0x188] sm:$0xff]
    %v146 = vld [vmem:[%s18 + $0x190] sm:$0xff]
    %v147 = vld [vmem:[%s18 + $0x198] sm:$0xff]
    %v148 = vld [vmem:[%s18 + $0x1a0] sm:$0xff]
    %v149 = vld [vmem:[%s18 + $0x1a8] sm:$0xff]
    %v150 = vld [vmem:[%s18 + $0x1b0] sm:$0xff]
    %v151 = vld [vmem:[%s18 + $0x1b8] sm:$0xff]
    %v152 = vld [vmem:[%s18 + $0x1c0] sm:$0xff]
    %v153 = vld [vmem:[%s18 + $0x1c8] sm:$0xff]
    %v154 = vld [vmem:[%s18 + $0x1d0] sm:$0xff]
    %v155 = vld [vmem:[%s18 + $0x1d8] sm:$0xff]
    %v156 = vld [vmem:[%s18 + $0x1e0] sm:$0xff]
    %v157 = vld [vmem:[%s18 + $0x1e8] sm:$0xff]
    %v158 = vld [vmem:[%s18 + $0x1f0] sm:$0xff]
    %v159 = vld [vmem:[%s18 + $0x1f8] sm:$0xff]
    %v160 = vld [vmem:[%s2] sm:$0xff]
    %v161 = vld [vmem:[%s2 + $0x8] sm:$0xff]
    %v162 = vld [vmem:[%s2 + $0x10] sm:$0xff]
    %v163 = vld [vmem:[%s2 + $0x18] sm:$0xff]
    %v164 = vld [vmem:[%s2 + $0x20] sm:$0xff]
    %v165 = vld [vmem:[%s2 + $0x28] sm:$0xff]
    %v166 = vld [vmem:[%s2 + $0x30] sm:$0xff]
    %v167 = vld [vmem:[%s2 + $0x38] sm:$0xff]
    %v168 = vld [vmem:[%s2 + $0x40] sm:$0xff]
    %v169 = vld [vmem:[%s2 + $0x48] sm:$0xff]
    %v170 = vld [vmem:[%s2 + $0x50] sm:$0xff]
    %v171 = vld [vmem:[%s2 + $0x58] sm:$0xff]
    %v172 = vld [vmem:[%s2 + $0x60] sm:$0xff]
    %v173 = vld [vmem:[%s2 + $0x68] sm:$0xff]
    %v174 = vld [vmem:[%s2 + $0x70] sm:$0xff]
    %v175 = vld [vmem:[%s2 + $0x78] sm:$0xff]
    %v176 = vld [vmem:[%s2 + $0x80] sm:$0xff]
    %v177 = vld [vmem:[%s2 + $0x88] sm:$0xff]
    %v178 = vld [vmem:[%s2 + $0x90] sm:$0xff]
    %v179 = vld [vmem:[%s2 + $0x98] sm:$0xff]
    %v180 = vld [vmem:[%s2 + $0xa0] sm:$0xff]
    %v181 = vld [vmem:[%s2 + $0xa8] sm:$0xff]
    %v182 = vld [vmem:[%s2 + $0xb0] sm:$0xff]
    %v183 = vld [vmem:[%s2 + $0xb8] sm:$0xff]
    %v184 = vld [vmem:[%s2 + $0xc0] sm:$0xff]
    %v185 = vld [vmem:[%s2 + $0xc8] sm:$0xff]
    %v186 = vld [vmem:[%s2 + $0xd0] sm:$0xff]
    %v187 = vld [vmem:[%s2 + $0xd8] sm:$0xff]
    %v188 = vld [vmem:[%s2 + $0xe0] sm:$0xff]
    %v189 = vld [vmem:[%s2 + $0xe8] sm:$0xff]
    %v190 = vld [vmem:[%s2 + $0xf0] sm:$0xff]
    %v191 = vld [vmem:[%s2 + $0xf8] sm:$0xff]
    %v192 = vld [vmem:[%s3] sm:$0x1]
    %v194 = vlaneseq
    %v195 = vshrl.u32 %v194, 7
    %v196 = vsub.s32 0, %v195
    %v197 = vrot.slane %v192, %v196
    %v201 = vunpack.c.l.s4 1983009808
    %v202 = vunpack.c.0.s8 %v201
    %v203 = vlaneseq
    %v204 = vshrl.u32 %v203, 7
    %v205 = vsub.s32 %v202, %v204
    %v206 = vrot.slane %v63, %v205
    %v207 = vcombine.high %v206, %v206
    %210 = vmatprep.subr.mxu0 0.0
    %211 = vmatpush1.msra.mxu0 %v175
    %212 = vmatprep.subr.mxu0 0.0
    %213 = vmatpush1.msra.mxu0 %v174
    %214 = vmatprep.subr.mxu0 0.0
    %215 = vmatpush1.msra.mxu0 %v173
    %216 = vmatprep.subr.mxu0 0.0
    %217 = vmatpush1.msra.mxu0 %v172
    %218 = vmatprep.subr.mxu0 0.0
    %219 = vmatpush1.msra.mxu0 %v171
    %220 = vmatprep.subr.mxu0 0.0
    %221 = vmatpush1.msra.mxu0 %v170
    %222 = vmatprep.subr.mxu0 0.0
    %223 = vmatpush1.msra.mxu0 %v169
    %224 = vmatprep.subr.mxu0 0.0
    %225 = vmatpush1.msra.mxu0 %v168
    %226 = vmatprep.subr.mxu0 0.0
    %227 = vmatpush1.msra.mxu0 %v167
    %228 = vmatprep.subr.mxu0 0.0
    %229 = vmatpush1.msra.mxu0 %v166
    %230 = vmatprep.subr.mxu0 0.0
    %231 = vmatpush1.msra.mxu0 %v165
    %232 = vmatprep.subr.mxu0 0.0
    %233 = vmatpush1.msra.mxu0 %v164
    %234 = vmatprep.subr.mxu0 0.0
    %235 = vmatpush1.msra.mxu0 %v163
    %236 = vmatprep.subr.mxu0 0.0
    %237 = vmatpush1.msra.mxu0 %v162
    %238 = vmatprep.subr.mxu0 0.0
    %239 = vmatpush1.msra.mxu0 %v161
    %240 = vmatprep.subr.mxu0 0.0
    %241 = vmatpush1.msra.mxu0 %v160
    %242 = vmatprep.subr.mxu0 0.0
    %243 = vmatpush2.msra.mxu0 %v191
    %244 = vmatprep.subr.mxu0 0.0
    %245 = vmatpush2.msra.mxu0 %v190
    %246 = vmatprep.subr.mxu0 0.0
    %247 = vmatpush2.msra.mxu0 %v189
    %248 = vmatprep.subr.mxu0 0.0
    %249 = vmatpush2.msra.mxu0 %v188
    %250 = vmatprep.subr.mxu0 0.0
    %251 = vmatpush2.msra.mxu0 %v187
    %252 = vmatprep.subr.mxu0 0.0
    %253 = vmatpush2.msra.mxu0 %v186
    %254 = vmatprep.subr.mxu0 0.0
    %255 = vmatpush2.msra.mxu0 %v185
    %256 = vmatprep.subr.mxu0 0.0
    %257 = vmatpush2.msra.mxu0 %v184
    %258 = vmatprep.subr.mxu0 0.0
    %259 = vmatpush2.msra.mxu0 %v183
    %260 = vmatprep.subr.mxu0 0.0
    %261 = vmatpush2.msra.mxu0 %v182
    %262 = vmatprep.subr.mxu0 0.0
    %263 = vmatpush2.msra.mxu0 %v181
    %264 = vmatprep.subr.mxu0 0.0
    %265 = vmatpush2.msra.mxu0 %v180
    %266 = vmatprep.subr.mxu0 0.0
    %267 = vmatpush2.msra.mxu0 %v179
    %268 = vmatprep.subr.mxu0 0.0
    %269 = vmatpush2.msra.mxu0 %v178
    %270 = vmatprep.subr.mxu0 0.0
    %271 = vmatpush2.msra.mxu0 %v177
    %272 = vmatprep.subr.mxu0 0.0
    %273 = vmatpush2.msra.mxu0 %v176
    %274 = vmatprep.mubr.f32.mxu0 %v207
    %275 = vmatmul.mubr.f32.gmra.mxu0 %v206
    %v276 = vpop.f32.mrf.mxu0
    %v277 = vadd.f32 %v197, %v276
    %v278 = vpop.f32.mrf.mxu0
    %279 = vdwg.mxu0
    %v280 = vmax.f32 %v277, 0.0
    %v281 = vld [vmem:[%s4] sm:$0xff]
    %v282 = vld [vmem:[%s4 + $0x8] sm:$0xff]
    %v283 = vld [vmem:[%s4 + $0x10] sm:$0xff]
    %v284 = vld [vmem:[%s4 + $0x18] sm:$0xff]
    %v285 = vld [vmem:[%s5] sm:$0x1]
    %v287 = vlaneseq
    %v288 = vshrl.u32 %v287, 7
    %v289 = vsub.s32 0, %v288
    %v290 = vrot.slane %v285, %v289
    %vm292 = vcmask 261120
    %v294 = vsel %vm292, %v280, 0
    %296 = vmatprep.subr.mxu0 0.0
    %297 = vmatpush1.msra.mxu0 0.0
    %298 = vmatprep.subr.mxu0 0.0
    %299 = vmatpush1.msra.mxu0 0.0
    %300 = vmatprep.subr.mxu0 0.0
    %301 = vmatpush1.msra.mxu0 0.0
    %302 = vmatprep.subr.mxu0 0.0
    %303 = vmatpush1.msra.mxu0 0.0
    %304 = vmatprep.subr.mxu0 0.0
    %305 = vmatpush1.msra.mxu0 0.0
    %306 = vmatprep.subr.mxu0 0.0
    %307 = vmatpush1.msra.mxu0 0.0
    %308 = vmatprep.subr.mxu0 0.0
    %309 = vmatpush1.msra.mxu0 0.0
    %310 = vmatprep.subr.mxu0 0.0
    %311 = vmatpush1.msra.mxu0 0.0
    %312 = vmatprep.subr.mxu0 0.0
    %313 = vmatpush1.msra.mxu0 0.0
    %314 = vmatprep.subr.mxu0 0.0
    %315 = vmatpush1.msra.mxu0 0.0
    %316 = vmatprep.subr.mxu0 0.0
    %317 = vmatpush1.msra.mxu0 0.0
    %318 = vmatprep.subr.mxu0 0.0
    %319 = vmatpush1.msra.mxu0 0.0
    %320 = vmatprep.subr.mxu0 0.0
    %321 = vmatpush1.msra.mxu0 %v284
    %322 = vmatprep.subr.mxu0 0.0
    %323 = vmatpush1.msra.mxu0 %v283
    %324 = vmatprep.subr.mxu0 0.0
    %325 = vmatpush1.msra.mxu0 %v282
    %326 = vmatprep.subr.mxu0 0.0
    %327 = vmatpush1.msra.mxu0 %v281
    %328 = vmatprep.subr.mxu0 0.0
    %329 = vmatpush2.msra.mxu0 0.0
    %330 = vmatprep.subr.mxu0 0.0
    %331 = vmatpush2.msra.mxu0 0.0
    %332 = vmatprep.subr.mxu0 0.0
    %333 = vmatpush2.msra.mxu0 0.0
    %334 = vmatprep.subr.mxu0 0.0
    %335 = vmatpush2.msra.mxu0 0.0
    %336 = vmatprep.subr.mxu0 0.0
    %337 = vmatpush2.msra.mxu0 0.0
    %338 = vmatprep.subr.mxu0 0.0
    %339 = vmatpush2.msra.mxu0 0.0
    %340 = vmatprep.subr.mxu0 0.0
    %341 = vmatpush2.msra.mxu0 0.0
    %342 = vmatprep.subr.mxu0 0.0
    %343 = vmatpush2.msra.mxu0 0.0
    %344 = vmatprep.subr.mxu0 0.0
    %345 = vmatpush2.msra.mxu0 0.0
    %346 = vmatprep.subr.mxu0 0.0
    %347 = vmatpush2.msra.mxu0 0.0
    %348 = vmatprep.subr.mxu0 0.0
    %349 = vmatpush2.msra.mxu0 0.0
    %350 = vmatprep.subr.mxu0 0.0
    %351 = vmatpush2.msra.mxu0 0.0
    %352 = vmatprep.subr.mxu0 0.0
    %353 = vmatpush2.msra.mxu0 0.0
    %354 = vmatprep.subr.mxu0 0.0
    %355 = vmatpush2.msra.mxu0 0.0
    %356 = vmatprep.subr.mxu0 0.0
    %357 = vmatpush2.msra.mxu0 0.0
    %358 = vmatprep.subr.mxu0 0.0
    %359 = vmatpush2.msra.mxu0 0.0
    %360 = vmatprep.mubr.f32.mxu0 0.0
    %361 = vmatmul.mubr.f32.gmra.mxu0 %v294
    %v362 = vpop.f32.mrf.mxu0
    %v363 = vadd.f32 %v290, %v362
    %v364 = vpop.f32.mrf.mxu0
    %365 = vdwg.mxu0
    %v366 = vmax.f32 %v363, 0.0
    %v367 = vld [vmem:[%s6] sm:$0xff]
    %v368 = vld [vmem:[%s6 + $0x8] sm:$0xff]
    %v369 = vld [vmem:[%s6 + $0x10] sm:$0xff]
    %v370 = vld [vmem:[%s6 + $0x18] sm:$0xff]
    %v371 = vld [vmem:[%s7] sm:$0x1]
    %v373 = vlaneseq
    %v374 = vshrl.u32 %v373, 7
    %v375 = vsub.s32 0, %v374
    %v376 = vrot.slane %v371, %v375
    %v379 = vsel %vm292, %v366, 0
    %381 = vmatprep.subr.mxu0 0.0
    %382 = vmatpush1.msra.mxu0 0.0
    %383 = vmatprep.subr.mxu0 0.0
    %384 = vmatpush1.msra.mxu0 0.0
    %385 = vmatprep.subr.mxu0 0.0
    %386 = vmatpush1.msra.mxu0 0.0
    %387 = vmatprep.subr.mxu0 0.0
    %388 = vmatpush1.msra.mxu0 0.0
    %389 = vmatprep.subr.mxu0 0.0
    %390 = vmatpush1.msra.mxu0 0.0
    %391 = vmatprep.subr.mxu0 0.0
    %392 = vmatpush1.msra.mxu0 0.0
    %393 = vmatprep.subr.mxu0 0.0
    %394 = vmatpush1.msra.mxu0 0.0
    %395 = vmatprep.subr.mxu0 0.0
    %396 = vmatpush1.msra.mxu0 0.0
    %397 = vmatprep.subr.mxu0 0.0
    %398 = vmatpush1.msra.mxu0 0.0
    %399 = vmatprep.subr.mxu0 0.0
    %400 = vmatpush1.msra.mxu0 0.0
    %401 = vmatprep.subr.mxu0 0.0
    %402 = vmatpush1.msra.mxu0 0.0
    %403 = vmatprep.subr.mxu0 0.0
    %404 = vmatpush1.msra.mxu0 0.0
    %405 = vmatprep.subr.mxu0 0.0
    %406 = vmatpush1.msra.mxu0 %v370
    %407 = vmatprep.subr.mxu0 0.0
    %408 = vmatpush1.msra.mxu0 %v369
    %409 = vmatprep.subr.mxu0 0.0
    %410 = vmatpush1.msra.mxu0 %v368
    %411 = vmatprep.subr.mxu0 0.0
    %412 = vmatpush1.msra.mxu0 %v367
    %413 = vmatprep.subr.mxu0 0.0
    %414 = vmatpush2.msra.mxu0 0.0
    %415 = vmatprep.subr.mxu0 0.0
    %416 = vmatpush2.msra.mxu0 0.0
    %417 = vmatprep.subr.mxu0 0.0
    %418 = vmatpush2.msra.mxu0 0.0
    %419 = vmatprep.subr.mxu0 0.0
    %420 = vmatpush2.msra.mxu0 0.0
    %421 = vmatprep.subr.mxu0 0.0
    %422 = vmatpush2.msra.mxu0 0.0
    %423 = vmatprep.subr.mxu0 0.0
    %424 = vmatpush2.msra.mxu0 0.0
    %425 = vmatprep.subr.mxu0 0.0
    %426 = vmatpush2.msra.mxu0 0.0
    %427 = vmatprep.subr.mxu0 0.0
    %428 = vmatpush2.msra.mxu0 0.0
    %429 = vmatprep.subr.mxu0 0.0
    %430 = vmatpush2.msra.mxu0 0.0
    %431 = vmatprep.subr.mxu0 0.0
    %432 = vmatpush2.msra.mxu0 0.0
    %433 = vmatprep.subr.mxu0 0.0
    %434 = vmatpush2.msra.mxu0 0.0
    %435 = vmatprep.subr.mxu0 0.0
    %436 = vmatpush2.msra.mxu0 0.0
    %437 = vmatprep.subr.mxu0 0.0
    %438 = vmatpush2.msra.mxu0 0.0
    %439 = vmatprep.subr.mxu0 0.0
    %440 = vmatpush2.msra.mxu0 0.0
    %441 = vmatprep.subr.mxu0 0.0
    %442 = vmatpush2.msra.mxu0 0.0
    %443 = vmatprep.subr.mxu0 0.0
    %444 = vmatpush2.msra.mxu0 0.0
    %445 = vmatprep.mubr.f32.mxu0 0.0
    %446 = vmatmul.mubr.f32.gmra.mxu0 %v379
    %v447 = vpop.f32.mrf.mxu0
    %v448 = vadd.f32 %v376, %v447
    %v449 = vpop.f32.mrf.mxu0
    %450 = vdwg.mxu0
    %v451 = vld [vmem:[%s8] sm:$0xff]
    %v452 = vld [vmem:[%s8 + $0x8] sm:$0xff]
    %v453 = vld [vmem:[%s8 + $0x10] sm:$0xff]
    %v454 = vld [vmem:[%s8 + $0x18] sm:$0xff]
    %v455 = vld [vmem:[%s9] sm:$0x1]
    %v457 = vlaneseq
    %v458 = vshrl.u32 %v457, 7
    %v459 = vsub.s32 0, %v458
    %v460 = vrot.slane %v455, %v459
    %462 = vmatprep.subr.mxu0 0.0
    %463 = vmatpush1.msra.mxu0 0.0
    %464 = vmatprep.subr.mxu0 0.0
    %465 = vmatpush1.msra.mxu0 0.0
    %466 = vmatprep.subr.mxu0 0.0
    %467 = vmatpush1.msra.mxu0 0.0
    %468 = vmatprep.subr.mxu0 0.0
    %469 = vmatpush1.msra.mxu0 0.0
    %470 = vmatprep.subr.mxu0 0.0
    %471 = vmatpush1.msra.mxu0 0.0
    %472 = vmatprep.subr.mxu0 0.0
    %473 = vmatpush1.msra.mxu0 0.0
    %474 = vmatprep.subr.mxu0 0.0
    %475 = vmatpush1.msra.mxu0 0.0
    %476 = vmatprep.subr.mxu0 0.0
    %477 = vmatpush1.msra.mxu0 0.0
    %478 = vmatprep.subr.mxu0 0.0
    %479 = vmatpush1.msra.mxu0 0.0
    %480 = vmatprep.subr.mxu0 0.0
    %481 = vmatpush1.msra.mxu0 0.0
    %482 = vmatprep.subr.mxu0 0.0
    %483 = vmatpush1.msra.mxu0 0.0
    %484 = vmatprep.subr.mxu0 0.0
    %485 = vmatpush1.msra.mxu0 0.0
    %486 = vmatprep.subr.mxu0 0.0
    %487 = vmatpush1.msra.mxu0 %v454
    %488 = vmatprep.subr.mxu0 0.0
    %489 = vmatpush1.msra.mxu0 %v453
    %490 = vmatprep.subr.mxu0 0.0
    %491 = vmatpush1.msra.mxu0 %v452
    %492 = vmatprep.subr.mxu0 0.0
    %493 = vmatpush1.msra.mxu0 %v451
    %494 = vmatprep.subr.mxu0 0.0
    %495 = vmatpush2.msra.mxu0 0.0
    %496 = vmatprep.subr.mxu0 0.0
    %497 = vmatpush2.msra.mxu0 0.0
    %498 = vmatprep.subr.mxu0 0.0
    %499 = vmatpush2.msra.mxu0 0.0
    %500 = vmatprep.subr.mxu0 0.0
    %501 = vmatpush2.msra.mxu0 0.0
    %502 = vmatprep.subr.mxu0 0.0
    %503 = vmatpush2.msra.mxu0 0.0
    %504 = vmatprep.subr.mxu0 0.0
    %505 = vmatpush2.msra.mxu0 0.0
    %506 = vmatprep.subr.mxu0 0.0
    %507 = vmatpush2.msra.mxu0 0.0
    %508 = vmatprep.subr.mxu0 0.0
    %509 = vmatpush2.msra.mxu0 0.0
    %510 = vmatprep.subr.mxu0 0.0
    %511 = vmatpush2.msra.mxu0 0.0
    %512 = vmatprep.subr.mxu0 0.0
    %513 = vmatpush2.msra.mxu0 0.0
    %514 = vmatprep.subr.mxu0 0.0
    %515 = vmatpush2.msra.mxu0 0.0
    %516 = vmatprep.subr.mxu0 0.0
    %517 = vmatpush2.msra.mxu0 0.0
    %518 = vmatprep.subr.mxu0 0.0
    %519 = vmatpush2.msra.mxu0 0.0
    %520 = vmatprep.subr.mxu0 0.0
    %521 = vmatpush2.msra.mxu0 0.0
    %522 = vmatprep.subr.mxu0 0.0
    %523 = vmatpush2.msra.mxu0 0.0
    %524 = vmatprep.subr.mxu0 0.0
    %525 = vmatpush2.msra.mxu0 0.0
    %526 = vmatprep.mubr.f32.mxu0 0.0
    %527 = vmatmul.mubr.f32.gmra.mxu0 %v379
    %v528 = vpop.f32.mrf.mxu0
    %v529 = vadd.f32 %v460, %v528
    %v530 = vpop.f32.mrf.mxu0
    %531 = vdwg.mxu0
    %v532 = vld [vmem:[%s1] sm:$0x3]
    %v533 = vmul.f32 %v529, 0.5
    %v534 = vmul.f32 %v533, 1.442695
    %v535 = vpow.pop %v534
    %v536 = vmul.f32 %v532, %v535
    %v537 = vadd.f32 %v448, %v536
    %v539 = vlaneseq
    %v540 = vshrl.u32 %v539, 7
    %v541 = vsub.s32 0, %v540
    %v542 = vrot.slane %v65, %v541
    %vm544 = vcmask 64512
    %v546 = vsel %vm544, %v537, 0
    %548 = vmatprep.subr.mxu0 0.0
    %549 = vmatpush1.msra.mxu0 0.0
    %550 = vmatprep.subr.mxu0 0.0
    %551 = vmatpush1.msra.mxu0 0.0
    %552 = vmatprep.subr.mxu0 0.0
    %553 = vmatpush1.msra.mxu0 0.0
    %554 = vmatprep.subr.mxu0 0.0
    %555 = vmatpush1.msra.mxu0 0.0
    %556 = vmatprep.subr.mxu0 0.0
    %557 = vmatpush1.msra.mxu0 0.0
    %558 = vmatprep.subr.mxu0 0.0
    %559 = vmatpush1.msra.mxu0 0.0
    %560 = vmatprep.subr.mxu0 0.0
    %561 = vmatpush1.msra.mxu0 0.0
    %562 = vmatprep.subr.mxu0 0.0
    %563 = vmatpush1.msra.mxu0 0.0
    %564 = vmatprep.subr.mxu0 0.0
    %565 = vmatpush1.msra.mxu0 0.0
    %566 = vmatprep.subr.mxu0 0.0
    %567 = vmatpush1.msra.mxu0 0.0
    %568 = vmatprep.subr.mxu0 0.0
    %569 = vmatpush1.msra.mxu0 0.0
    %570 = vmatprep.subr.mxu0 0.0
    %571 = vmatpush1.msra.mxu0 0.0
    %572 = vmatprep.subr.mxu0 0.0
    %573 = vmatpush1.msra.mxu0 0.0
    %574 = vmatprep.subr.mxu0 0.0
    %575 = vmatpush1.msra.mxu0 0.0
    %576 = vmatprep.subr.mxu0 0.0
    %577 = vmatpush1.msra.mxu0 0.0
    %578 = vmatprep.subr.mxu0 0.0
    %579 = vmatpush1.msra.mxu0 %v64
    %580 = vmatprep.subr.mxu0 0.0
    %581 = vmatpush2.msra.mxu0 0.0
    %582 = vmatprep.subr.mxu0 0.0
    %583 = vmatpush2.msra.mxu0 0.0
    %584 = vmatprep.subr.mxu0 0.0
    %585 = vmatpush2.msra.mxu0 0.0
    %586 = vmatprep.subr.mxu0 0.0
    %587 = vmatpush2.msra.mxu0 0.0
    %588 = vmatprep.subr.mxu0 0.0
    %589 = vmatpush2.msra.mxu0 0.0
    %590 = vmatprep.subr.mxu0 0.0
    %591 = vmatpush2.msra.mxu0 0.0
    %592 = vmatprep.subr.mxu0 0.0
    %593 = vmatpush2.msra.mxu0 0.0
    %594 = vmatprep.subr.mxu0 0.0
    %595 = vmatpush2.msra.mxu0 0.0
    %596 = vmatprep.subr.mxu0 0.0
    %597 = vmatpush2.msra.mxu0 0.0
    %598 = vmatprep.subr.mxu0 0.0
    %599 = vmatpush2.msra.mxu0 0.0
    %600 = vmatprep.subr.mxu0 0.0
    %601 = vmatpush2.msra.mxu0 0.0
    %602 = vmatprep.subr.mxu0 0.0
    %603 = vmatpush2.msra.mxu0 0.0
    %604 = vmatprep.subr.mxu0 0.0
    %605 = vmatpush2.msra.mxu0 0.0
    %606 = vmatprep.subr.mxu0 0.0
    %607 = vmatpush2.msra.mxu0 0.0
    %608 = vmatprep.subr.mxu0 0.0
    %609 = vmatpush2.msra.mxu0 0.0
    %610 = vmatprep.subr.mxu0 0.0
    %611 = vmatpush2.msra.mxu0 0.0
    %612 = vmatprep.mubr.f32.mxu0 0.0
    %613 = vmatmul.mubr.f32.gmra.mxu0 %v546
    %v614 = vpop.f32.mrf.mxu0
    %v615 = vadd.f32 %v542, %v614
    %v616 = vpop.f32.mrf.mxu0
    %617 = vdwg.mxu0
    %v618 = vmax.f32 %v615, 0.0
    %v620 = vlaneseq
    %v621 = vshrl.u32 %v620, 7
    %v622 = vsub.s32 0, %v621
    %v623 = vrot.slane %v70, %v622
    %v626 = vsel %vm292, %v618, 0
    %628 = vmatprep.subr.mxu0 0.0
    %629 = vmatpush1.msra.mxu0 0.0
    %630 = vmatprep.subr.mxu0 0.0
    %631 = vmatpush1.msra.mxu0 0.0
    %632 = vmatprep.subr.mxu0 0.0
    %633 = vmatpush1.msra.mxu0 0.0
    %634 = vmatprep.subr.mxu0 0.0
    %635 = vmatpush1.msra.mxu0 0.0
    %636 = vmatprep.subr.mxu0 0.0
    %637 = vmatpush1.msra.mxu0 0.0
    %638 = vmatprep.subr.mxu0 0.0
    %639 = vmatpush1.msra.mxu0 0.0
    %640 = vmatprep.subr.mxu0 0.0
    %641 = vmatpush1.msra.mxu0 0.0
    %642 = vmatprep.subr.mxu0 0.0
    %643 = vmatpush1.msra.mxu0 0.0
    %644 = vmatprep.subr.mxu0 0.0
    %645 = vmatpush1.msra.mxu0 0.0
    %646 = vmatprep.subr.mxu0 0.0
    %647 = vmatpush1.msra.mxu0 0.0
    %648 = vmatprep.subr.mxu0 0.0
    %649 = vmatpush1.msra.mxu0 0.0
    %650 = vmatprep.subr.mxu0 0.0
    %651 = vmatpush1.msra.mxu0 0.0
    %652 = vmatprep.subr.mxu0 0.0
    %653 = vmatpush1.msra.mxu0 %v69
    %654 = vmatprep.subr.mxu0 0.0
    %655 = vmatpush1.msra.mxu0 %v68
    %656 = vmatprep.subr.mxu0 0.0
    %657 = vmatpush1.msra.mxu0 %v67
    %658 = vmatprep.subr.mxu0 0.0
    %659 = vmatpush1.msra.mxu0 %v66
    %660 = vmatprep.subr.mxu0 0.0
    %661 = vmatpush2.msra.mxu0 0.0
    %662 = vmatprep.subr.mxu0 0.0
    %663 = vmatpush2.msra.mxu0 0.0
    %664 = vmatprep.subr.mxu0 0.0
    %665 = vmatpush2.msra.mxu0 0.0
    %666 = vmatprep.subr.mxu0 0.0
    %667 = vmatpush2.msra.mxu0 0.0
    %668 = vmatprep.subr.mxu0 0.0
    %669 = vmatpush2.msra.mxu0 0.0
    %670 = vmatprep.subr.mxu0 0.0
    %671 = vmatpush2.msra.mxu0 0.0
    %672 = vmatprep.subr.mxu0 0.0
    %673 = vmatpush2.msra.mxu0 0.0
    %674 = vmatprep.subr.mxu0 0.0
    %675 = vmatpush2.msra.mxu0 0.0
    %676 = vmatprep.subr.mxu0 0.0
    %677 = vmatpush2.msra.mxu0 0.0
    %678 = vmatprep.subr.mxu0 0.0
    %679 = vmatpush2.msra.mxu0 0.0
    %680 = vmatprep.subr.mxu0 0.0
    %681 = vmatpush2.msra.mxu0 0.0
    %682 = vmatprep.subr.mxu0 0.0
    %683 = vmatpush2.msra.mxu0 0.0
    %684 = vmatprep.subr.mxu0 0.0
    %685 = vmatpush2.msra.mxu0 0.0
    %686 = vmatprep.subr.mxu0 0.0
    %687 = vmatpush2.msra.mxu0 0.0
    %688 = vmatprep.subr.mxu0 0.0
    %689 = vmatpush2.msra.mxu0 0.0
    %690 = vmatprep.subr.mxu0 0.0
    %691 = vmatpush2.msra.mxu0 0.0
    %692 = vmatprep.mubr.f32.mxu0 0.0
    %693 = vmatmul.mubr.f32.gmra.mxu0 %v626
    %v694 = vpop.f32.mrf.mxu0
    %v695 = vadd.f32 %v623, %v694
    %v696 = vpop.f32.mrf.mxu0
    %697 = vdwg.mxu0
    %v698 = vmax.f32 %v695, 0.0
    %v700 = vlaneseq
    %v701 = vshrl.u32 %v700, 7
    %v702 = vsub.s32 0, %v701
    %v703 = vrot.slane %v87, %v702
    %v704 = vlaneseq
    %v705 = vshrl.u32 %v704, 7
    %v706 = vsub.s32 1, %v705
    %v707 = vrot.slane %v87, %v706
    %v708 = vlaneseq
    %v709 = vshrl.u32 %v708, 7
    %v710 = vsub.s32 2, %v709
    %v711 = vrot.slane %v87, %v710
    %v712 = vlaneseq
    %v713 = vshrl.u32 %v712, 7
    %v714 = vsub.s32 3, %v713
    %v715 = vrot.slane %v87, %v714
    %v721 = vsel %vm292, %v698, 0
    %723 = vmatprep.subr.mxu0 0.0
    %724 = vmatpush1.msra.mxu0 0.0
    %725 = vmatprep.subr.mxu0 0.0
    %726 = vmatpush1.msra.mxu0 0.0
    %727 = vmatprep.subr.mxu0 0.0
    %728 = vmatpush1.msra.mxu0 0.0
    %729 = vmatprep.subr.mxu0 0.0
    %730 = vmatpush1.msra.mxu0 0.0
    %731 = vmatprep.subr.mxu0 0.0
    %732 = vmatpush1.msra.mxu0 0.0
    %733 = vmatprep.subr.mxu0 0.0
    %734 = vmatpush1.msra.mxu0 0.0
    %735 = vmatprep.subr.mxu0 0.0
    %736 = vmatpush1.msra.mxu0 0.0
    %737 = vmatprep.subr.mxu0 0.0
    %738 = vmatpush1.msra.mxu0 0.0
    %739 = vmatprep.subr.mxu0 0.0
    %740 = vmatpush1.msra.mxu0 0.0
    %741 = vmatprep.subr.mxu0 0.0
    %742 = vmatpush1.msra.mxu0 0.0
    %743 = vmatprep.subr.mxu0 0.0
    %744 = vmatpush1.msra.mxu0 0.0
    %745 = vmatprep.subr.mxu0 0.0
    %746 = vmatpush1.msra.mxu0 0.0
    %747 = vmatprep.subr.mxu0 %v84
    %748 = vmatpush1.msra.mxu0 %v83
    %749 = vmatprep.subr.mxu0 %v80
    %750 = vmatpush1.msra.mxu0 %v79
    %751 = vmatprep.subr.mxu0 %v76
    %752 = vmatpush1.msra.mxu0 %v75
    %753 = vmatprep.subr.mxu0 %v72
    %754 = vmatpush1.msra.mxu0 %v71
    %755 = vmatprep.subr.mxu0 0.0
    %756 = vmatpush2.msra.mxu0 0.0
    %757 = vmatprep.subr.mxu0 0.0
    %758 = vmatpush2.msra.mxu0 0.0
    %759 = vmatprep.subr.mxu0 0.0
    %760 = vmatpush2.msra.mxu0 0.0
    %761 = vmatprep.subr.mxu0 0.0
    %762 = vmatpush2.msra.mxu0 0.0
    %763 = vmatprep.subr.mxu0 0.0
    %764 = vmatpush2.msra.mxu0 0.0
    %765 = vmatprep.subr.mxu0 0.0
    %766 = vmatpush2.msra.mxu0 0.0
    %767 = vmatprep.subr.mxu0 0.0
    %768 = vmatpush2.msra.mxu0 0.0
    %769 = vmatprep.subr.mxu0 0.0
    %770 = vmatpush2.msra.mxu0 0.0
    %771 = vmatprep.subr.mxu0 0.0
    %772 = vmatpush2.msra.mxu0 0.0
    %773 = vmatprep.subr.mxu0 0.0
    %774 = vmatpush2.msra.mxu0 0.0
    %775 = vmatprep.subr.mxu0 0.0
    %776 = vmatpush2.msra.mxu0 0.0
    %777 = vmatprep.subr.mxu0 0.0
    %778 = vmatpush2.msra.mxu0 0.0
    %779 = vmatprep.subr.mxu0 0.0
    %780 = vmatpush2.msra.mxu0 0.0
    %781 = vmatprep.subr.mxu0 0.0
    %782 = vmatpush2.msra.mxu0 0.0
    %783 = vmatprep.subr.mxu0 0.0
    %784 = vmatpush2.msra.mxu0 0.0
    %785 = vmatprep.subr.mxu0 0.0
    %786 = vmatpush2.msra.mxu0 0.0
    %787 = vmatprep.mubr.f32.mxu0 0.0
    %788 = vmatmul.mubr.f32.gmra.mxu0 %v721
    %v789 = vpop.f32.mrf.mxu0
    %v790 = vadd.f32 %v703, %v789
    %v791 = vpop.f32.mrf.mxu0
    %v792 = vadd.f32 %v707, %v791
    %793 = vdwg.mxu0
    %794 = vmatprep.subr.mxu0 0.0
    %795 = vmatpush1.msra.mxu0 0.0
    %796 = vmatprep.subr.mxu0 0.0
    %797 = vmatpush1.msra.mxu0 0.0
    %798 = vmatprep.subr.mxu0 0.0
    %799 = vmatpush1.msra.mxu0 0.0
    %800 = vmatprep.subr.mxu0 0.0
    %801 = vmatpush1.msra.mxu0 0.0
    %802 = vmatprep.subr.mxu0 0.0
    %803 = vmatpush1.msra.mxu0 0.0
    %804 = vmatprep.subr.mxu0 0.0
    %805 = vmatpush1.msra.mxu0 0.0
    %806 = vmatprep.subr.mxu0 0.0
    %807 = vmatpush1.msra.mxu0 0.0
    %808 = vmatprep.subr.mxu0 0.0
    %809 = vmatpush1.msra.mxu0 0.0
    %810 = vmatprep.subr.mxu0 0.0
    %811 = vmatpush1.msra.mxu0 0.0
    %812 = vmatprep.subr.mxu0 0.0
    %813 = vmatpush1.msra.mxu0 0.0
    %814 = vmatprep.subr.mxu0 0.0
    %815 = vmatpush1.msra.mxu0 0.0
    %816 = vmatprep.subr.mxu0 0.0
    %817 = vmatpush1.msra.mxu0 0.0
    %818 = vmatprep.subr.mxu0 %v86
    %819 = vmatpush1.msra.mxu0 %v85
    %820 = vmatprep.subr.mxu0 %v82
    %821 = vmatpush1.msra.mxu0 %v81
    %822 = vmatprep.subr.mxu0 %v78
    %823 = vmatpush1.msra.mxu0 %v77
    %824 = vmatprep.subr.mxu0 %v74
    %825 = vmatpush1.msra.mxu0 %v73
    %826 = vmatprep.subr.mxu0 0.0
    %827 = vmatpush2.msra.mxu0 0.0
    %828 = vmatprep.subr.mxu0 0.0
    %829 = vmatpush2.msra.mxu0 0.0
    %830 = vmatprep.subr.mxu0 0.0
    %831 = vmatpush2.msra.mxu0 0.0
    %832 = vmatprep.subr.mxu0 0.0
    %833 = vmatpush2.msra.mxu0 0.0
    %834 = vmatprep.subr.mxu0 0.0
    %835 = vmatpush2.msra.mxu0 0.0
    %836 = vmatprep.subr.mxu0 0.0
    %837 = vmatpush2.msra.mxu0 0.0
    %838 = vmatprep.subr.mxu0 0.0
    %839 = vmatpush2.msra.mxu0 0.0
    %840 = vmatprep.subr.mxu0 0.0
    %841 = vmatpush2.msra.mxu0 0.0
    %842 = vmatprep.subr.mxu0 0.0
    %843 = vmatpush2.msra.mxu0 0.0
    %844 = vmatprep.subr.mxu0 0.0
    %845 = vmatpush2.msra.mxu0 0.0
    %846 = vmatprep.subr.mxu0 0.0
    %847 = vmatpush2.msra.mxu0 0.0
    %848 = vmatprep.subr.mxu0 0.0
    %849 = vmatpush2.msra.mxu0 0.0
    %850 = vmatprep.subr.mxu0 0.0
    %851 = vmatpush2.msra.mxu0 0.0
    %852 = vmatprep.subr.mxu0 0.0
    %853 = vmatpush2.msra.mxu0 0.0
    %854 = vmatprep.subr.mxu0 0.0
    %855 = vmatpush2.msra.mxu0 0.0
    %856 = vmatprep.subr.mxu0 0.0
    %857 = vmatpush2.msra.mxu0 0.0
    %858 = vmatprep.mubr.f32.mxu0 0.0
    %859 = vmatmul.mubr.f32.gmra.mxu0 %v721
    %v860 = vpop.f32.mrf.mxu0
    %v861 = vadd.f32 %v711, %v860
    %v862 = vpop.f32.mrf.mxu0
    %v863 = vadd.f32 %v715, %v862
    %864 = vdwg.mxu0
    %v865 = vsub.f32 0.0, %v861
    %v866 = vsub.f32 0.0, %v863
    %v867 = vmul.f32 %v865, 1.442695
    %v868 = vpow.pop %v867
    %v869 = vmul.f32 %v866, 1.442695
    %v870 = vpow.pop %v869
    %v873 = vcombine.low %v790, %v792
    %v875 = vunpack.c.l.s4 1983009808
    %v876 = vunpack.c.0.s8 %v875
    %v877 = vlaneseq
    %v878 = vshrl.u32 %v877, 7
    %v879 = vsub.s32 %v876, %v878
    %v880 = vrot.slane %v873, %v879
    %v882 = vsub.f32 %v63, %v880
    %v883 = vmul.f32 %v882, -0.5
    %v886 = vcombine.low %v868, %v870
    %v888 = vunpack.c.l.s4 1983009808
    %v889 = vunpack.c.0.s8 %v888
    %v890 = vlaneseq
    %v891 = vshrl.u32 %v890, 7
    %v892 = vsub.s32 %v889, %v891
    %v893 = vrot.slane %v886, %v892
    %v895 = vmul.f32 %v883, %v893
    %v896 = vmul.f32 %v882, 0.5
    %v897 = vmul.f32 %v896, %v882
    %v898 = vmul.f32 %v897, %v893
    %v899 = vadd.f32 %v898, -0.5
    %v900 = vmul.f32 %v899, -0.5
    %v903 = vunpack.c.l.s4 1983009808
    %v904 = vunpack.c.0.s8 %v903
    %v905 = vlaneseq
    %v906 = vshrl.u32 %v905, 7
    %v907 = vsub.s32 %v904, %v906
    %v908 = vrot.slane %v895, %v907
    %v909 = vcombine.high %v908, %v908
    %v914 = vunpack.c.l.s4 1983009808
    %v915 = vunpack.c.0.s8 %v914
    %v916 = vlaneseq
    %v917 = vshrl.u32 %v916, 7
    %v918 = vsub.s32 %v915, %v917
    %v919 = vrot.slane %v900, %v918
    %v920 = vcombine.high %v919, %v919
    %923 = vmatprep.subr.mxu0 0.0
    %924 = vmatpush1.msra.mxu0 %v111
    %925 = vmatprep.subr.mxu0 0.0
    %926 = vmatpush1.msra.mxu0 %v110
    %927 = vmatprep.subr.mxu0 0.0
    %928 = vmatpush1.msra.mxu0 %v109
    %929 = vmatprep.subr.mxu0 0.0
    %930 = vmatpush1.msra.mxu0 %v108
    %931 = vmatprep.subr.mxu0 0.0
    %932 = vmatpush1.msra.mxu0 %v107
    %933 = vmatprep.subr.mxu0 0.0
    %934 = vmatpush1.msra.mxu0 %v106
    %935 = vmatprep.subr.mxu0 0.0
    %936 = vmatpush1.msra.mxu0 %v105
    %937 = vmatprep.subr.mxu0 0.0
    %938 = vmatpush1.msra.mxu0 %v104
    %939 = vmatprep.subr.mxu0 0.0
    %940 = vmatpush1.msra.mxu0 %v103
    %941 = vmatprep.subr.mxu0 0.0
    %942 = vmatpush1.msra.mxu0 %v102
    %943 = vmatprep.subr.mxu0 0.0
    %944 = vmatpush1.msra.mxu0 %v101
    %945 = vmatprep.subr.mxu0 0.0
    %946 = vmatpush1.msra.mxu0 %v100
    %947 = vmatprep.subr.mxu0 0.0
    %948 = vmatpush1.msra.mxu0 %v99
    %949 = vmatprep.subr.mxu0 0.0
    %950 = vmatpush1.msra.mxu0 %v98
    %951 = vmatprep.subr.mxu0 0.0
    %952 = vmatpush1.msra.mxu0 %v97
    %953 = vmatprep.subr.mxu0 0.0
    %954 = vmatpush1.msra.mxu0 %v96
    %955 = vmatprep.subr.mxu0 0.0
    %956 = vmatpush2.msra.mxu0 %v127
    %957 = vmatprep.subr.mxu0 0.0
    %958 = vmatpush2.msra.mxu0 %v126
    %959 = vmatprep.subr.mxu0 0.0
    %960 = vmatpush2.msra.mxu0 %v125
    %961 = vmatprep.subr.mxu0 0.0
    %962 = vmatpush2.msra.mxu0 %v124
    %963 = vmatprep.subr.mxu0 0.0
    %964 = vmatpush2.msra.mxu0 %v123
    %965 = vmatprep.subr.mxu0 0.0
    %966 = vmatpush2.msra.mxu0 %v122
    %967 = vmatprep.subr.mxu0 0.0
    %968 = vmatpush2.msra.mxu0 %v121
    %969 = vmatprep.subr.mxu0 0.0
    %970 = vmatpush2.msra.mxu0 %v120
    %971 = vmatprep.subr.mxu0 0.0
    %972 = vmatpush2.msra.mxu0 %v119
    %973 = vmatprep.subr.mxu0 0.0
    %974 = vmatpush2.msra.mxu0 %v118
    %975 = vmatprep.subr.mxu0 0.0
    %976 = vmatpush2.msra.mxu0 %v117
    %977 = vmatprep.subr.mxu0 0.0
    %978 = vmatpush2.msra.mxu0 %v116
    %979 = vmatprep.subr.mxu0 0.0
    %980 = vmatpush2.msra.mxu0 %v115
    %981 = vmatprep.subr.mxu0 0.0
    %982 = vmatpush2.msra.mxu0 %v114
    %983 = vmatprep.subr.mxu0 0.0
    %984 = vmatpush2.msra.mxu0 %v113
    %985 = vmatprep.subr.mxu0 0.0
    %986 = vmatpush2.msra.mxu0 %v112
    %987 = vmatprep.mubr.f32.mxu0 %v909
    %988 = vmatmul.mubr.f32.gmra.mxu0 %v908
    %v989 = vpop.f32.mrf.mxu0
    %v990 = vadd.f32 0.0, %v989
    %v991 = vpop.f32.mrf.mxu0
    %992 = vdwg.mxu0
    %993 = vmatprep.subr.mxu0 0.0
    %994 = vmatpush1.msra.mxu0 %v143
    %995 = vmatprep.subr.mxu0 0.0
    %996 = vmatpush1.msra.mxu0 %v142
    %997 = vmatprep.subr.mxu0 0.0
    %998 = vmatpush1.msra.mxu0 %v141
    %999 = vmatprep.subr.mxu0 0.0
    %1000 = vmatpush1.msra.mxu0 %v140
    %1001 = vmatprep.subr.mxu0 0.0
    %1002 = vmatpush1.msra.mxu0 %v139
    %1003 = vmatprep.subr.mxu0 0.0
    %1004 = vmatpush1.msra.mxu0 %v138
    %1005 = vmatprep.subr.mxu0 0.0
    %1006 = vmatpush1.msra.mxu0 %v137
    %1007 = vmatprep.subr.mxu0 0.0
    %1008 = vmatpush1.msra.mxu0 %v136
    %1009 = vmatprep.subr.mxu0 0.0
    %1010 = vmatpush1.msra.mxu0 %v135
    %1011 = vmatprep.subr.mxu0 0.0
    %1012 = vmatpush1.msra.mxu0 %v134
    %1013 = vmatprep.subr.mxu0 0.0
    %1014 = vmatpush1.msra.mxu0 %v133
    %1015 = vmatprep.subr.mxu0 0.0
    %1016 = vmatpush1.msra.mxu0 %v132
    %1017 = vmatprep.subr.mxu0 0.0
    %1018 = vmatpush1.msra.mxu0 %v131
    %1019 = vmatprep.subr.mxu0 0.0
    %1020 = vmatpush1.msra.mxu0 %v130
    %1021 = vmatprep.subr.mxu0 0.0
    %1022 = vmatpush1.msra.mxu0 %v129
    %1023 = vmatprep.subr.mxu0 0.0
    %1024 = vmatpush1.msra.mxu0 %v128
    %1025 = vmatprep.subr.mxu0 0.0
    %1026 = vmatpush2.msra.mxu0 %v159
    %1027 = vmatprep.subr.mxu0 0.0
    %1028 = vmatpush2.msra.mxu0 %v158
    %1029 = vmatprep.subr.mxu0 0.0
    %1030 = vmatpush2.msra.mxu0 %v157
    %1031 = vmatprep.subr.mxu0 0.0
    %1032 = vmatpush2.msra.mxu0 %v156
    %1033 = vmatprep.subr.mxu0 0.0
    %1034 = vmatpush2.msra.mxu0 %v155
    %1035 = vmatprep.subr.mxu0 0.0
    %1036 = vmatpush2.msra.mxu0 %v154
    %1037 = vmatprep.subr.mxu0 0.0
    %1038 = vmatpush2.msra.mxu0 %v153
    %1039 = vmatprep.subr.mxu0 0.0
    %1040 = vmatpush2.msra.mxu0 %v152
    %1041 = vmatprep.subr.mxu0 0.0
    %1042 = vmatpush2.msra.mxu0 %v151
    %1043 = vmatprep.subr.mxu0 0.0
    %1044 = vmatpush2.msra.mxu0 %v150
    %1045 = vmatprep.subr.mxu0 0.0
    %1046 = vmatpush2.msra.mxu0 %v149
    %1047 = vmatprep.subr.mxu0 0.0
    %1048 = vmatpush2.msra.mxu0 %v148
    %1049 = vmatprep.subr.mxu0 0.0
    %1050 = vmatpush2.msra.mxu0 %v147
    %1051 = vmatprep.subr.mxu0 0.0
    %1052 = vmatpush2.msra.mxu0 %v146
    %1053 = vmatprep.subr.mxu0 0.0
    %1054 = vmatpush2.msra.mxu0 %v145
    %1055 = vmatprep.subr.mxu0 0.0
    %1056 = vmatpush2.msra.mxu0 %v144
    %1057 = vmatprep.mubr.f32.mxu0 %v920
    %1058 = vmatmul.mubr.f32.gmra.mxu0 %v919
    %v1059 = vpop.f32.mrf.mxu0
    %v1060 = vadd.f32 %v990, %v1059
    %v1061 = vpop.f32.mrf.mxu0
    %1062 = vdwg.mxu0
    %vm1063 = vcmp.gt.f32.partialorder %v698, 0.0
    %v1064 = vsel %vm1063, %v1060, 0.0
    %v1066 = vsel %vm292, %v1064, 0
    %1068 = vmatprep.subr.mxu0 0.0
    %1069 = vmatpush1.msra.mxu0 0.0
    %1070 = vmatprep.subr.mxu0 0.0
    %1071 = vmatpush1.msra.mxu0 0.0
    %1072 = vmatprep.subr.mxu0 0.0
    %1073 = vmatpush1.msra.mxu0 0.0
    %1074 = vmatprep.subr.mxu0 0.0
    %1075 = vmatpush1.msra.mxu0 0.0
    %1076 = vmatprep.subr.mxu0 0.0
    %1077 = vmatpush1.msra.mxu0 0.0
    %1078 = vmatprep.subr.mxu0 0.0
    %1079 = vmatpush1.msra.mxu0 0.0
    %1080 = vmatprep.subr.mxu0 0.0
    %1081 = vmatpush1.msra.mxu0 0.0
    %1082 = vmatprep.subr.mxu0 0.0
    %1083 = vmatpush1.msra.mxu0 0.0
    %1084 = vmatprep.subr.mxu0 0.0
    %1085 = vmatpush1.msra.mxu0 0.0
    %1086 = vmatprep.subr.mxu0 0.0
    %1087 = vmatpush1.msra.mxu0 0.0
    %1088 = vmatprep.subr.mxu0 0.0
    %1089 = vmatpush1.msra.mxu0 0.0
    %1090 = vmatprep.subr.mxu0 0.0
    %1091 = vmatpush1.msra.mxu0 0.0
    %1092 = vmatprep.subr.mxu0 0.0
    %1093 = vmatpush1.msra.mxu0 %v95
    %1094 = vmatprep.subr.mxu0 0.0
    %1095 = vmatpush1.msra.mxu0 %v94
    %1096 = vmatprep.subr.mxu0 0.0
    %1097 = vmatpush1.msra.mxu0 %v93
    %1098 = vmatprep.subr.mxu0 0.0
    %1099 = vmatpush1.msra.mxu0 %v92
    %1100 = vmatprep.subr.mxu0 0.0
    %1101 = vmatpush2.msra.mxu0 0.0
    %1102 = vmatprep.subr.mxu0 0.0
    %1103 = vmatpush2.msra.mxu0 0.0
    %1104 = vmatprep.subr.mxu0 0.0
    %1105 = vmatpush2.msra.mxu0 0.0
    %1106 = vmatprep.subr.mxu0 0.0
    %1107 = vmatpush2.msra.mxu0 0.0
    %1108 = vmatprep.subr.mxu0 0.0
    %1109 = vmatpush2.msra.mxu0 0.0
    %1110 = vmatprep.subr.mxu0 0.0
    %1111 = vmatpush2.msra.mxu0 0.0
    %1112 = vmatprep.subr.mxu0 0.0
    %1113 = vmatpush2.msra.mxu0 0.0
    %1114 = vmatprep.subr.mxu0 0.0
    %1115 = vmatpush2.msra.mxu0 0.0
    %1116 = vmatprep.subr.mxu0 0.0
    %1117 = vmatpush2.msra.mxu0 0.0
    %1118 = vmatprep.subr.mxu0 0.0
    %1119 = vmatpush2.msra.mxu0 0.0
    %1120 = vmatprep.subr.mxu0 0.0
    %1121 = vmatpush2.msra.mxu0 0.0
    %1122 = vmatprep.subr.mxu0 0.0
    %1123 = vmatpush2.msra.mxu0 0.0
    %1124 = vmatprep.subr.mxu0 0.0
    %1125 = vmatpush2.msra.mxu0 0.0
    %1126 = vmatprep.subr.mxu0 0.0
    %1127 = vmatpush2.msra.mxu0 0.0
    %1128 = vmatprep.subr.mxu0 0.0
    %1129 = vmatpush2.msra.mxu0 0.0
    %1130 = vmatprep.subr.mxu0 0.0
    %1131 = vmatpush2.msra.mxu0 0.0
    %1132 = vmatprep.mubr.f32.mxu0 0.0
    %1133 = vmatmul.mubr.f32.gmra.mxu0 %v1066
    %v1134 = vpop.f32.mrf.mxu0
    %v1135 = vadd.f32 0.0, %v1134
    %v1136 = vpop.f32.mrf.mxu0
    %1137 = vdwg.mxu0
    %vm1138 = vcmp.gt.f32.partialorder %v618, 0.0
    %v1139 = vsel %vm1138, %v1135, 0.0
    %v1141 = vsel %vm292, %v1139, 0
    %1143 = vmatprep.subr.mxu0 0.0
    %1144 = vmatpush1.msra.mxu0 0.0
    %1145 = vmatprep.subr.mxu0 0.0
    %1146 = vmatpush1.msra.mxu0 0.0
    %1147 = vmatprep.subr.mxu0 0.0
    %1148 = vmatpush1.msra.mxu0 0.0
    %1149 = vmatprep.subr.mxu0 0.0
    %1150 = vmatpush1.msra.mxu0 0.0
    %1151 = vmatprep.subr.mxu0 0.0
    %1152 = vmatpush1.msra.mxu0 0.0
    %1153 = vmatprep.subr.mxu0 0.0
    %1154 = vmatpush1.msra.mxu0 0.0
    %1155 = vmatprep.subr.mxu0 0.0
    %1156 = vmatpush1.msra.mxu0 0.0
    %1157 = vmatprep.subr.mxu0 0.0
    %1158 = vmatpush1.msra.mxu0 0.0
    %1159 = vmatprep.subr.mxu0 0.0
    %1160 = vmatpush1.msra.mxu0 0.0
    %1161 = vmatprep.subr.mxu0 0.0
    %1162 = vmatpush1.msra.mxu0 0.0
    %1163 = vmatprep.subr.mxu0 0.0
    %1164 = vmatpush1.msra.mxu0 0.0
    %1165 = vmatprep.subr.mxu0 0.0
    %1166 = vmatpush1.msra.mxu0 0.0
    %1167 = vmatprep.subr.mxu0 0.0
    %1168 = vmatpush1.msra.mxu0 %v91
    %1169 = vmatprep.subr.mxu0 0.0
    %1170 = vmatpush1.msra.mxu0 %v90
    %1171 = vmatprep.subr.mxu0 0.0
    %1172 = vmatpush1.msra.mxu0 %v89
    %1173 = vmatprep.subr.mxu0 0.0
    %1174 = vmatpush1.msra.mxu0 %v88
    %1175 = vmatprep.subr.mxu0 0.0
    %1176 = vmatpush2.msra.mxu0 0.0
    %1177 = vmatprep.subr.mxu0 0.0
    %1178 = vmatpush2.msra.mxu0 0.0
    %1179 = vmatprep.subr.mxu0 0.0
    %1180 = vmatpush2.msra.mxu0 0.0
    %1181 = vmatprep.subr.mxu0 0.0
    %1182 = vmatpush2.msra.mxu0 0.0
    %1183 = vmatprep.subr.mxu0 0.0
    %1184 = vmatpush2.msra.mxu0 0.0
    %1185 = vmatprep.subr.mxu0 0.0
    %1186 = vmatpush2.msra.mxu0 0.0
    %1187 = vmatprep.subr.mxu0 0.0
    %1188 = vmatpush2.msra.mxu0 0.0
    %1189 = vmatprep.subr.mxu0 0.0
    %1190 = vmatpush2.msra.mxu0 0.0
    %1191 = vmatprep.subr.mxu0 0.0
    %1192 = vmatpush2.msra.mxu0 0.0
    %1193 = vmatprep.subr.mxu0 0.0
    %1194 = vmatpush2.msra.mxu0 0.0
    %1195 = vmatprep.subr.mxu0 0.0
    %1196 = vmatpush2.msra.mxu0 0.0
    %1197 = vmatprep.subr.mxu0 0.0
    %1198 = vmatpush2.msra.mxu0 0.0
    %1199 = vmatprep.subr.mxu0 0.0
    %1200 = vmatpush2.msra.mxu0 0.0
    %1201 = vmatprep.subr.mxu0 0.0
    %1202 = vmatpush2.msra.mxu0 0.0
    %1203 = vmatprep.subr.mxu0 0.0
    %1204 = vmatpush2.msra.mxu0 0.0
    %1205 = vmatprep.subr.mxu0 0.0
    %1206 = vmatpush2.msra.mxu0 0.0
    %1207 = vmatprep.mubr.f32.mxu0 0.0
    %1208 = vmatmul.mubr.f32.gmra.mxu0 %v1141
    %v1209 = vpop.f32.mrf.mxu0
    %v1210 = vadd.f32 0.0, %v1209
    %v1211 = vpop.f32.mrf.mxu0
    %1212 = vdwg.mxu0
    %v1213 = vsub.f32 0.0, %v529
    %v1214 = vmul.f32 %v1213, 1.442695
    %v1215 = vpow.pop %v1214
    %v1216 = vsub.f32 %v537, %v448
    %v1217 = vmul.f32 %v537, -0.5
    %v1218 = vsub.f32 %v1210, %v1217
    %v1219 = vmul.f32 %v1216, -0.5
    %v1220 = vmul.f32 %v1219, %v1215
    %v1221 = vadd.f32 %v1218, %v1220
    %v1222 = vsub.f32 %v1221, %v1220
    %v1223 = vmul.f32 %v532, 0.5
    %v1224 = vmul.f32 %v1223, %v535
    %v1225 = vmul.f32 %v1221, %v1224
    %v1226 = vmul.f32 %v1216, 0.5
    %v1227 = vmul.f32 %v1226, %v1216
    %v1228 = vmul.f32 %v1227, %v1215
    %v1229 = vsub.f32 0.5, %v1228
    %v1230 = vmul.f32 %v1229, -0.5
    %v1231 = vadd.f32 %v1225, %v1230
    %v1232 = vmul.f32 %v1222, %v1222
    %vm1233 = vcmask 58368
    %v1234 = vsel %vm1233, %v1232, 0.0
    %1235 = vadd.xlane.f32.xlu0 %v1234
    %v1236 = vpop.xlane.xlu0 %1235
    %vm1237 = vcmask 1041408
    %v1238 = vsel %vm1237, %v1236, 0.0
    %v1239 = vrot.slane %v1238, 4
    %v1240 = vadd.f32 %v1238, %v1239
    %v1241 = vrot.slane %v1240, 2
    %v1242 = vadd.f32 %v1240, %v1241
    %v1243 = vrot.slane %v1242, 1
    %v1244 = vadd.f32 %v1242, %v1243
    %v1245 = vrsqrt.pop %v1244
    %v1246 = vmul.f32 %v1244, %v1245
    %vm1247 = vcmp.eq.f32.partialorder %v1244, inf
    %v1248 = vsel %vm1247, %v1244, %v1246
    %vm1249 = vcmp.eq.f32.partialorder %v1244, 0.0
    %v1250 = vand.u32 %v1244, 2147483648
    %v1251 = vsel %vm1249, %v1250, %v1248
    %v1252 = vadd.f32 %v1251, 1e-06
    %v1253 = vrcp.pop %v1252
    %v1254 = vmul.f32 5.0, %v1253
    %v1255 = vmin.f32 %v1254, 1.0
    %v1256 = vmul.f32 %v1222, %v1255
    %v1257 = vmul.f32 %v1256, 0.1
    %v1258 = vadd.f32 %v448, %v1257
    %v1259 = vmul.f32 %v1231, %v1231
    %v1260 = vsel %vm1233, %v1259, 0.0
    %1261 = vadd.xlane.f32.xlu0 %v1260
    %v1262 = vpop.xlane.xlu0 %1261
    %v1263 = vsel %vm1237, %v1262, 0.0
    %v1264 = vrot.slane %v1263, 4
    %v1265 = vadd.f32 %v1263, %v1264
    %v1266 = vrot.slane %v1265, 2
    %v1267 = vadd.f32 %v1265, %v1266
    %v1268 = vrot.slane %v1267, 1
    %v1269 = vadd.f32 %v1267, %v1268
    %v1270 = vrsqrt.pop %v1269
    %v1271 = vmul.f32 %v1269, %v1270
    %vm1272 = vcmp.eq.f32.partialorder %v1269, inf
    %v1273 = vsel %vm1272, %v1269, %v1271
    %vm1274 = vcmp.eq.f32.partialorder %v1269, 0.0
    %v1275 = vand.u32 %v1269, 2147483648
    %v1276 = vsel %vm1274, %v1275, %v1273
    %v1277 = vadd.f32 %v1276, 1e-06
    %v1278 = vrcp.pop %v1277
    %v1279 = vmul.f32 5.0, %v1278
    %v1280 = vmin.f32 %v1279, 1.0
    %v1281 = vmul.f32 %v1231, %v1280
    %v1282 = vmul.f32 %v1281, 0.1
    %v1283 = vadd.f32 %v529, %v1282
    %s1284 = scalar_lea.vmem %s1, 2
    %v1285 = vld [vmem:[%s1284] sm:$0x3]
    %v1286 = vmul.f32 %v1283, 0.5
    %v1287 = vmul.f32 %v1286, 1.442695
    %v1288 = vpow.pop %v1287
    %v1289 = vmul.f32 %v1285, %v1288
    %v1290 = vadd.f32 %v1258, %v1289
    %v1292 = vsel %vm544, %v1290, 0
    %1294 = vmatprep.subr.mxu0 0.0
    %1295 = vmatpush1.msra.mxu0 0.0
    %1296 = vmatprep.subr.mxu0 0.0
    %1297 = vmatpush1.msra.mxu0 0.0
    %1298 = vmatprep.subr.mxu0 0.0
    %1299 = vmatpush1.msra.mxu0 0.0
    %1300 = vmatprep.subr.mxu0 0.0
    %1301 = vmatpush1.msra.mxu0 0.0
    %1302 = vmatprep.subr.mxu0 0.0
    %1303 = vmatpush1.msra.mxu0 0.0
    %1304 = vmatprep.subr.mxu0 0.0
    %1305 = vmatpush1.msra.mxu0 0.0
    %1306 = vmatprep.subr.mxu0 0.0
    %1307 = vmatpush1.msra.mxu0 0.0
    %1308 = vmatprep.subr.mxu0 0.0
    %1309 = vmatpush1.msra.mxu0 0.0
    %1310 = vmatprep.subr.mxu0 0.0
    %1311 = vmatpush1.msra.mxu0 0.0
    %1312 = vmatprep.subr.mxu0 0.0
    %1313 = vmatpush1.msra.mxu0 0.0
    %1314 = vmatprep.subr.mxu0 0.0
    %1315 = vmatpush1.msra.mxu0 0.0
    %1316 = vmatprep.subr.mxu0 0.0
    %1317 = vmatpush1.msra.mxu0 0.0
    %1318 = vmatprep.subr.mxu0 0.0
    %1319 = vmatpush1.msra.mxu0 0.0
    %1320 = vmatprep.subr.mxu0 0.0
    %1321 = vmatpush1.msra.mxu0 0.0
    %1322 = vmatprep.subr.mxu0 0.0
    %1323 = vmatpush1.msra.mxu0 0.0
    %1324 = vmatprep.subr.mxu0 0.0
    %1325 = vmatpush1.msra.mxu0 %v64
    %1326 = vmatprep.subr.mxu0 0.0
    %1327 = vmatpush2.msra.mxu0 0.0
    %1328 = vmatprep.subr.mxu0 0.0
    %1329 = vmatpush2.msra.mxu0 0.0
    %1330 = vmatprep.subr.mxu0 0.0
    %1331 = vmatpush2.msra.mxu0 0.0
    %1332 = vmatprep.subr.mxu0 0.0
    %1333 = vmatpush2.msra.mxu0 0.0
    %1334 = vmatprep.subr.mxu0 0.0
    %1335 = vmatpush2.msra.mxu0 0.0
    %1336 = vmatprep.subr.mxu0 0.0
    %1337 = vmatpush2.msra.mxu0 0.0
    %1338 = vmatprep.subr.mxu0 0.0
    %1339 = vmatpush2.msra.mxu0 0.0
    %1340 = vmatprep.subr.mxu0 0.0
    %1341 = vmatpush2.msra.mxu0 0.0
    %1342 = vmatprep.subr.mxu0 0.0
    %1343 = vmatpush2.msra.mxu0 0.0
    %1344 = vmatprep.subr.mxu0 0.0
    %1345 = vmatpush2.msra.mxu0 0.0
    %1346 = vmatprep.subr.mxu0 0.0
    %1347 = vmatpush2.msra.mxu0 0.0
    %1348 = vmatprep.subr.mxu0 0.0
    %1349 = vmatpush2.msra.mxu0 0.0
    %1350 = vmatprep.subr.mxu0 0.0
    %1351 = vmatpush2.msra.mxu0 0.0
    %1352 = vmatprep.subr.mxu0 0.0
    %1353 = vmatpush2.msra.mxu0 0.0
    %1354 = vmatprep.subr.mxu0 0.0
    %1355 = vmatpush2.msra.mxu0 0.0
    %1356 = vmatprep.subr.mxu0 0.0
    %1357 = vmatpush2.msra.mxu0 0.0
    %1358 = vmatprep.mubr.f32.mxu0 0.0
    %1359 = vmatmul.mubr.f32.gmra.mxu0 %v1292
    %v1360 = vpop.f32.mrf.mxu0
    %v1361 = vadd.f32 %v542, %v1360
    %v1362 = vpop.f32.mrf.mxu0
    %1363 = vdwg.mxu0
    %v1364 = vmax.f32 %v1361, 0.0
    %v1366 = vsel %vm292, %v1364, 0
    %1368 = vmatprep.subr.mxu0 0.0
    %1369 = vmatpush1.msra.mxu0 0.0
    %1370 = vmatprep.subr.mxu0 0.0
    %1371 = vmatpush1.msra.mxu0 0.0
    %1372 = vmatprep.subr.mxu0 0.0
    %1373 = vmatpush1.msra.mxu0 0.0
    %1374 = vmatprep.subr.mxu0 0.0
    %1375 = vmatpush1.msra.mxu0 0.0
    %1376 = vmatprep.subr.mxu0 0.0
    %1377 = vmatpush1.msra.mxu0 0.0
    %1378 = vmatprep.subr.mxu0 0.0
    %1379 = vmatpush1.msra.mxu0 0.0
    %1380 = vmatprep.subr.mxu0 0.0
    %1381 = vmatpush1.msra.mxu0 0.0
    %1382 = vmatprep.subr.mxu0 0.0
    %1383 = vmatpush1.msra.mxu0 0.0
    %1384 = vmatprep.subr.mxu0 0.0
    %1385 = vmatpush1.msra.mxu0 0.0
    %1386 = vmatprep.subr.mxu0 0.0
    %1387 = vmatpush1.msra.mxu0 0.0
    %1388 = vmatprep.subr.mxu0 0.0
    %1389 = vmatpush1.msra.mxu0 0.0
    %1390 = vmatprep.subr.mxu0 0.0
    %1391 = vmatpush1.msra.mxu0 0.0
    %1392 = vmatprep.subr.mxu0 0.0
    %1393 = vmatpush1.msra.mxu0 %v69
    %1394 = vmatprep.subr.mxu0 0.0
    %1395 = vmatpush1.msra.mxu0 %v68
    %1396 = vmatprep.subr.mxu0 0.0
    %1397 = vmatpush1.msra.mxu0 %v67
    %1398 = vmatprep.subr.mxu0 0.0
    %1399 = vmatpush1.msra.mxu0 %v66
    %1400 = vmatprep.subr.mxu0 0.0
    %1401 = vmatpush2.msra.mxu0 0.0
    %1402 = vmatprep.subr.mxu0 0.0
    %1403 = vmatpush2.msra.mxu0 0.0
    %1404 = vmatprep.subr.mxu0 0.0
    %1405 = vmatpush2.msra.mxu0 0.0
    %1406 = vmatprep.subr.mxu0 0.0
    %1407 = vmatpush2.msra.mxu0 0.0
    %1408 = vmatprep.subr.mxu0 0.0
    %1409 = vmatpush2.msra.mxu0 0.0
    %1410 = vmatprep.subr.mxu0 0.0
    %1411 = vmatpush2.msra.mxu0 0.0
    %1412 = vmatprep.subr.mxu0 0.0
    %1413 = vmatpush2.msra.mxu0 0.0
    %1414 = vmatprep.subr.mxu0 0.0
    %1415 = vmatpush2.msra.mxu0 0.0
    %1416 = vmatprep.subr.mxu0 0.0
    %1417 = vmatpush2.msra.mxu0 0.0
    %1418 = vmatprep.subr.mxu0 0.0
    %1419 = vmatpush2.msra.mxu0 0.0
    %1420 = vmatprep.subr.mxu0 0.0
    %1421 = vmatpush2.msra.mxu0 0.0
    %1422 = vmatprep.subr.mxu0 0.0
    %1423 = vmatpush2.msra.mxu0 0.0
    %1424 = vmatprep.subr.mxu0 0.0
    %1425 = vmatpush2.msra.mxu0 0.0
    %1426 = vmatprep.subr.mxu0 0.0
    %1427 = vmatpush2.msra.mxu0 0.0
    %1428 = vmatprep.subr.mxu0 0.0
    %1429 = vmatpush2.msra.mxu0 0.0
    %1430 = vmatprep.subr.mxu0 0.0
    %1431 = vmatpush2.msra.mxu0 0.0
    %1432 = vmatprep.mubr.f32.mxu0 0.0
    %1433 = vmatmul.mubr.f32.gmra.mxu0 %v1366
    %v1434 = vpop.f32.mrf.mxu0
    %v1435 = vadd.f32 %v623, %v1434
    %v1436 = vpop.f32.mrf.mxu0
    %1437 = vdwg.mxu0
    %v1438 = vmax.f32 %v1435, 0.0
    %v1440 = vsel %vm292, %v1438, 0
    %1442 = vmatprep.subr.mxu0 0.0
    %1443 = vmatpush1.msra.mxu0 0.0
    %1444 = vmatprep.subr.mxu0 0.0
    %1445 = vmatpush1.msra.mxu0 0.0
    %1446 = vmatprep.subr.mxu0 0.0
    %1447 = vmatpush1.msra.mxu0 0.0
    %1448 = vmatprep.subr.mxu0 0.0
    %1449 = vmatpush1.msra.mxu0 0.0
    %1450 = vmatprep.subr.mxu0 0.0
    %1451 = vmatpush1.msra.mxu0 0.0
    %1452 = vmatprep.subr.mxu0 0.0
    %1453 = vmatpush1.msra.mxu0 0.0
    %1454 = vmatprep.subr.mxu0 0.0
    %1455 = vmatpush1.msra.mxu0 0.0
    %1456 = vmatprep.subr.mxu0 0.0
    %1457 = vmatpush1.msra.mxu0 0.0
    %1458 = vmatprep.subr.mxu0 0.0
    %1459 = vmatpush1.msra.mxu0 0.0
    %1460 = vmatprep.subr.mxu0 0.0
    %1461 = vmatpush1.msra.mxu0 0.0
    %1462 = vmatprep.subr.mxu0 0.0
    %1463 = vmatpush1.msra.mxu0 0.0
    %1464 = vmatprep.subr.mxu0 0.0
    %1465 = vmatpush1.msra.mxu0 0.0
    %1466 = vmatprep.subr.mxu0 %v84
    %1467 = vmatpush1.msra.mxu0 %v83
    %1468 = vmatprep.subr.mxu0 %v80
    %1469 = vmatpush1.msra.mxu0 %v79
    %1470 = vmatprep.subr.mxu0 %v76
    %1471 = vmatpush1.msra.mxu0 %v75
    %1472 = vmatprep.subr.mxu0 %v72
    %1473 = vmatpush1.msra.mxu0 %v71
    %1474 = vmatprep.subr.mxu0 0.0
    %1475 = vmatpush2.msra.mxu0 0.0
    %1476 = vmatprep.subr.mxu0 0.0
    %1477 = vmatpush2.msra.mxu0 0.0
    %1478 = vmatprep.subr.mxu0 0.0
    %1479 = vmatpush2.msra.mxu0 0.0
    %1480 = vmatprep.subr.mxu0 0.0
    %1481 = vmatpush2.msra.mxu0 0.0
    %1482 = vmatprep.subr.mxu0 0.0
    %1483 = vmatpush2.msra.mxu0 0.0
    %1484 = vmatprep.subr.mxu0 0.0
    %1485 = vmatpush2.msra.mxu0 0.0
    %1486 = vmatprep.subr.mxu0 0.0
    %1487 = vmatpush2.msra.mxu0 0.0
    %1488 = vmatprep.subr.mxu0 0.0
    %1489 = vmatpush2.msra.mxu0 0.0
    %1490 = vmatprep.subr.mxu0 0.0
    %1491 = vmatpush2.msra.mxu0 0.0
    %1492 = vmatprep.subr.mxu0 0.0
    %1493 = vmatpush2.msra.mxu0 0.0
    %1494 = vmatprep.subr.mxu0 0.0
    %1495 = vmatpush2.msra.mxu0 0.0
    %1496 = vmatprep.subr.mxu0 0.0
    %1497 = vmatpush2.msra.mxu0 0.0
    %1498 = vmatprep.subr.mxu0 0.0
    %1499 = vmatpush2.msra.mxu0 0.0
    %1500 = vmatprep.subr.mxu0 0.0
    %1501 = vmatpush2.msra.mxu0 0.0
    %1502 = vmatprep.subr.mxu0 0.0
    %1503 = vmatpush2.msra.mxu0 0.0
    %1504 = vmatprep.subr.mxu0 0.0
    %1505 = vmatpush2.msra.mxu0 0.0
    %1506 = vmatprep.mubr.f32.mxu0 0.0
    %1507 = vmatmul.mubr.f32.gmra.mxu0 %v1440
    %v1508 = vpop.f32.mrf.mxu0
    %v1509 = vadd.f32 %v703, %v1508
    %v1510 = vpop.f32.mrf.mxu0
    %v1511 = vadd.f32 %v707, %v1510
    %1512 = vdwg.mxu0
    %1513 = vmatprep.subr.mxu0 0.0
    %1514 = vmatpush1.msra.mxu0 0.0
    %1515 = vmatprep.subr.mxu0 0.0
    %1516 = vmatpush1.msra.mxu0 0.0
    %1517 = vmatprep.subr.mxu0 0.0
    %1518 = vmatpush1.msra.mxu0 0.0
    %1519 = vmatprep.subr.mxu0 0.0
    %1520 = vmatpush1.msra.mxu0 0.0
    %1521 = vmatprep.subr.mxu0 0.0
    %1522 = vmatpush1.msra.mxu0 0.0
    %1523 = vmatprep.subr.mxu0 0.0
    %1524 = vmatpush1.msra.mxu0 0.0
    %1525 = vmatprep.subr.mxu0 0.0
    %1526 = vmatpush1.msra.mxu0 0.0
    %1527 = vmatprep.subr.mxu0 0.0
    %1528 = vmatpush1.msra.mxu0 0.0
    %1529 = vmatprep.subr.mxu0 0.0
    %1530 = vmatpush1.msra.mxu0 0.0
    %1531 = vmatprep.subr.mxu0 0.0
    %1532 = vmatpush1.msra.mxu0 0.0
    %1533 = vmatprep.subr.mxu0 0.0
    %1534 = vmatpush1.msra.mxu0 0.0
    %1535 = vmatprep.subr.mxu0 0.0
    %1536 = vmatpush1.msra.mxu0 0.0
    %1537 = vmatprep.subr.mxu0 %v86
    %1538 = vmatpush1.msra.mxu0 %v85
    %1539 = vmatprep.subr.mxu0 %v82
    %1540 = vmatpush1.msra.mxu0 %v81
    %1541 = vmatprep.subr.mxu0 %v78
    %1542 = vmatpush1.msra.mxu0 %v77
    %1543 = vmatprep.subr.mxu0 %v74
    %1544 = vmatpush1.msra.mxu0 %v73
    %1545 = vmatprep.subr.mxu0 0.0
    %1546 = vmatpush2.msra.mxu0 0.0
    %1547 = vmatprep.subr.mxu0 0.0
    %1548 = vmatpush2.msra.mxu0 0.0
    %1549 = vmatprep.subr.mxu0 0.0
    %1550 = vmatpush2.msra.mxu0 0.0
    %1551 = vmatprep.subr.mxu0 0.0
    %1552 = vmatpush2.msra.mxu0 0.0
    %1553 = vmatprep.subr.mxu0 0.0
    %1554 = vmatpush2.msra.mxu0 0.0
    %1555 = vmatprep.subr.mxu0 0.0
    %1556 = vmatpush2.msra.mxu0 0.0
    %1557 = vmatprep.subr.mxu0 0.0
    %1558 = vmatpush2.msra.mxu0 0.0
    %1559 = vmatprep.subr.mxu0 0.0
    %1560 = vmatpush2.msra.mxu0 0.0
    %1561 = vmatprep.subr.mxu0 0.0
    %1562 = vmatpush2.msra.mxu0 0.0
    %1563 = vmatprep.subr.mxu0 0.0
    %1564 = vmatpush2.msra.mxu0 0.0
    %1565 = vmatprep.subr.mxu0 0.0
    %1566 = vmatpush2.msra.mxu0 0.0
    %1567 = vmatprep.subr.mxu0 0.0
    %1568 = vmatpush2.msra.mxu0 0.0
    %1569 = vmatprep.subr.mxu0 0.0
    %1570 = vmatpush2.msra.mxu0 0.0
    %1571 = vmatprep.subr.mxu0 0.0
    %1572 = vmatpush2.msra.mxu0 0.0
    %1573 = vmatprep.subr.mxu0 0.0
    %1574 = vmatpush2.msra.mxu0 0.0
    %1575 = vmatprep.subr.mxu0 0.0
    %1576 = vmatpush2.msra.mxu0 0.0
    %1577 = vmatprep.mubr.f32.mxu0 0.0
    %1578 = vmatmul.mubr.f32.gmra.mxu0 %v1440
    %v1579 = vpop.f32.mrf.mxu0
    %v1580 = vadd.f32 %v711, %v1579
    %v1581 = vpop.f32.mrf.mxu0
    %v1582 = vadd.f32 %v715, %v1581
    %1583 = vdwg.mxu0
    %v1584 = vsub.f32 0.0, %v1580
    %v1585 = vsub.f32 0.0, %v1582
    %v1586 = vmul.f32 %v1584, 1.442695
    %v1587 = vpow.pop %v1586
    %v1588 = vmul.f32 %v1585, 1.442695
    %v1589 = vpow.pop %v1588
    %v1592 = vcombine.low %v1509, %v1511
    %v1594 = vunpack.c.l.s4 1983009808
    %v1595 = vunpack.c.0.s8 %v1594
    %v1596 = vlaneseq
    %v1597 = vshrl.u32 %v1596, 7
    %v1598 = vsub.s32 %v1595, %v1597
    %v1599 = vrot.slane %v1592, %v1598
    %v1601 = vsub.f32 %v63, %v1599
    %v1602 = vmul.f32 %v1601, -0.5
    %v1605 = vcombine.low %v1587, %v1589
    %v1607 = vunpack.c.l.s4 1983009808
    %v1608 = vunpack.c.0.s8 %v1607
    %v1609 = vlaneseq
    %v1610 = vshrl.u32 %v1609, 7
    %v1611 = vsub.s32 %v1608, %v1610
    %v1612 = vrot.slane %v1605, %v1611
    %v1614 = vmul.f32 %v1602, %v1612
    %v1615 = vmul.f32 %v1601, 0.5
    %v1616 = vmul.f32 %v1615, %v1601
    %v1617 = vmul.f32 %v1616, %v1612
    %v1618 = vadd.f32 %v1617, -0.5
    %v1619 = vmul.f32 %v1618, -0.5
    %v1622 = vunpack.c.l.s4 1983009808
    %v1623 = vunpack.c.0.s8 %v1622
    %v1624 = vlaneseq
    %v1625 = vshrl.u32 %v1624, 7
    %v1626 = vsub.s32 %v1623, %v1625
    %v1627 = vrot.slane %v1614, %v1626
    %v1628 = vcombine.high %v1627, %v1627
    %v1633 = vunpack.c.l.s4 1983009808
    %v1634 = vunpack.c.0.s8 %v1633
    %v1635 = vlaneseq
    %v1636 = vshrl.u32 %v1635, 7
    %v1637 = vsub.s32 %v1634, %v1636
    %v1638 = vrot.slane %v1619, %v1637
    %v1639 = vcombine.high %v1638, %v1638
    %1642 = vmatprep.subr.mxu0 0.0
    %1643 = vmatpush1.msra.mxu0 %v111
    %1644 = vmatprep.subr.mxu0 0.0
    %1645 = vmatpush1.msra.mxu0 %v110
    %1646 = vmatprep.subr.mxu0 0.0
    %1647 = vmatpush1.msra.mxu0 %v109
    %1648 = vmatprep.subr.mxu0 0.0
    %1649 = vmatpush1.msra.mxu0 %v108
    %1650 = vmatprep.subr.mxu0 0.0
    %1651 = vmatpush1.msra.mxu0 %v107
    %1652 = vmatprep.subr.mxu0 0.0
    %1653 = vmatpush1.msra.mxu0 %v106
    %1654 = vmatprep.subr.mxu0 0.0
    %1655 = vmatpush1.msra.mxu0 %v105
    %1656 = vmatprep.subr.mxu0 0.0
    %1657 = vmatpush1.msra.mxu0 %v104
    %1658 = vmatprep.subr.mxu0 0.0
    %1659 = vmatpush1.msra.mxu0 %v103
    %1660 = vmatprep.subr.mxu0 0.0
    %1661 = vmatpush1.msra.mxu0 %v102
    %1662 = vmatprep.subr.mxu0 0.0
    %1663 = vmatpush1.msra.mxu0 %v101
    %1664 = vmatprep.subr.mxu0 0.0
    %1665 = vmatpush1.msra.mxu0 %v100
    %1666 = vmatprep.subr.mxu0 0.0
    %1667 = vmatpush1.msra.mxu0 %v99
    %1668 = vmatprep.subr.mxu0 0.0
    %1669 = vmatpush1.msra.mxu0 %v98
    %1670 = vmatprep.subr.mxu0 0.0
    %1671 = vmatpush1.msra.mxu0 %v97
    %1672 = vmatprep.subr.mxu0 0.0
    %1673 = vmatpush1.msra.mxu0 %v96
    %1674 = vmatprep.subr.mxu0 0.0
    %1675 = vmatpush2.msra.mxu0 %v127
    %1676 = vmatprep.subr.mxu0 0.0
    %1677 = vmatpush2.msra.mxu0 %v126
    %1678 = vmatprep.subr.mxu0 0.0
    %1679 = vmatpush2.msra.mxu0 %v125
    %1680 = vmatprep.subr.mxu0 0.0
    %1681 = vmatpush2.msra.mxu0 %v124
    %1682 = vmatprep.subr.mxu0 0.0
    %1683 = vmatpush2.msra.mxu0 %v123
    %1684 = vmatprep.subr.mxu0 0.0
    %1685 = vmatpush2.msra.mxu0 %v122
    %1686 = vmatprep.subr.mxu0 0.0
    %1687 = vmatpush2.msra.mxu0 %v121
    %1688 = vmatprep.subr.mxu0 0.0
    %1689 = vmatpush2.msra.mxu0 %v120
    %1690 = vmatprep.subr.mxu0 0.0
    %1691 = vmatpush2.msra.mxu0 %v119
    %1692 = vmatprep.subr.mxu0 0.0
    %1693 = vmatpush2.msra.mxu0 %v118
    %1694 = vmatprep.subr.mxu0 0.0
    %1695 = vmatpush2.msra.mxu0 %v117
    %1696 = vmatprep.subr.mxu0 0.0
    %1697 = vmatpush2.msra.mxu0 %v116
    %1698 = vmatprep.subr.mxu0 0.0
    %1699 = vmatpush2.msra.mxu0 %v115
    %1700 = vmatprep.subr.mxu0 0.0
    %1701 = vmatpush2.msra.mxu0 %v114
    %1702 = vmatprep.subr.mxu0 0.0
    %1703 = vmatpush2.msra.mxu0 %v113
    %1704 = vmatprep.subr.mxu0 0.0
    %1705 = vmatpush2.msra.mxu0 %v112
    %1706 = vmatprep.mubr.f32.mxu0 %v1628
    %1707 = vmatmul.mubr.f32.gmra.mxu0 %v1627
    %v1708 = vpop.f32.mrf.mxu0
    %v1709 = vadd.f32 0.0, %v1708
    %v1710 = vpop.f32.mrf.mxu0
    %1711 = vdwg.mxu0
    %1712 = vmatprep.subr.mxu0 0.0
    %1713 = vmatpush1.msra.mxu0 %v143
    %1714 = vmatprep.subr.mxu0 0.0
    %1715 = vmatpush1.msra.mxu0 %v142
    %1716 = vmatprep.subr.mxu0 0.0
    %1717 = vmatpush1.msra.mxu0 %v141
    %1718 = vmatprep.subr.mxu0 0.0
    %1719 = vmatpush1.msra.mxu0 %v140
    %1720 = vmatprep.subr.mxu0 0.0
    %1721 = vmatpush1.msra.mxu0 %v139
    %1722 = vmatprep.subr.mxu0 0.0
    %1723 = vmatpush1.msra.mxu0 %v138
    %1724 = vmatprep.subr.mxu0 0.0
    %1725 = vmatpush1.msra.mxu0 %v137
    %1726 = vmatprep.subr.mxu0 0.0
    %1727 = vmatpush1.msra.mxu0 %v136
    %1728 = vmatprep.subr.mxu0 0.0
    %1729 = vmatpush1.msra.mxu0 %v135
    %1730 = vmatprep.subr.mxu0 0.0
    %1731 = vmatpush1.msra.mxu0 %v134
    %1732 = vmatprep.subr.mxu0 0.0
    %1733 = vmatpush1.msra.mxu0 %v133
    %1734 = vmatprep.subr.mxu0 0.0
    %1735 = vmatpush1.msra.mxu0 %v132
    %1736 = vmatprep.subr.mxu0 0.0
    %1737 = vmatpush1.msra.mxu0 %v131
    %1738 = vmatprep.subr.mxu0 0.0
    %1739 = vmatpush1.msra.mxu0 %v130
    %1740 = vmatprep.subr.mxu0 0.0
    %1741 = vmatpush1.msra.mxu0 %v129
    %1742 = vmatprep.subr.mxu0 0.0
    %1743 = vmatpush1.msra.mxu0 %v128
    %1744 = vmatprep.subr.mxu0 0.0
    %1745 = vmatpush2.msra.mxu0 %v159
    %1746 = vmatprep.subr.mxu0 0.0
    %1747 = vmatpush2.msra.mxu0 %v158
    %1748 = vmatprep.subr.mxu0 0.0
    %1749 = vmatpush2.msra.mxu0 %v157
    %1750 = vmatprep.subr.mxu0 0.0
    %1751 = vmatpush2.msra.mxu0 %v156
    %1752 = vmatprep.subr.mxu0 0.0
    %1753 = vmatpush2.msra.mxu0 %v155
    %1754 = vmatprep.subr.mxu0 0.0
    %1755 = vmatpush2.msra.mxu0 %v154
    %1756 = vmatprep.subr.mxu0 0.0
    %1757 = vmatpush2.msra.mxu0 %v153
    %1758 = vmatprep.subr.mxu0 0.0
    %1759 = vmatpush2.msra.mxu0 %v152
    %1760 = vmatprep.subr.mxu0 0.0
    %1761 = vmatpush2.msra.mxu0 %v151
    %1762 = vmatprep.subr.mxu0 0.0
    %1763 = vmatpush2.msra.mxu0 %v150
    %1764 = vmatprep.subr.mxu0 0.0
    %1765 = vmatpush2.msra.mxu0 %v149
    %1766 = vmatprep.subr.mxu0 0.0
    %1767 = vmatpush2.msra.mxu0 %v148
    %1768 = vmatprep.subr.mxu0 0.0
    %1769 = vmatpush2.msra.mxu0 %v147
    %1770 = vmatprep.subr.mxu0 0.0
    %1771 = vmatpush2.msra.mxu0 %v146
    %1772 = vmatprep.subr.mxu0 0.0
    %1773 = vmatpush2.msra.mxu0 %v145
    %1774 = vmatprep.subr.mxu0 0.0
    %1775 = vmatpush2.msra.mxu0 %v144
    %1776 = vmatprep.mubr.f32.mxu0 %v1639
    %1777 = vmatmul.mubr.f32.gmra.mxu0 %v1638
    %v1778 = vpop.f32.mrf.mxu0
    %v1779 = vadd.f32 %v1709, %v1778
    %v1780 = vpop.f32.mrf.mxu0
    %1781 = vdwg.mxu0
    %vm1782 = vcmp.gt.f32.partialorder %v1438, 0.0
    %v1783 = vsel %vm1782, %v1779, 0.0
    %v1785 = vsel %vm292, %v1783, 0
    %1787 = vmatprep.subr.mxu0 0.0
    %1788 = vmatpush1.msra.mxu0 0.0
    %1789 = vmatprep.subr.mxu0 0.0
    %1790 = vmatpush1.msra.mxu0 0.0
    %1791 = vmatprep.subr.mxu0 0.0
    %1792 = vmatpush1.msra.mxu0 0.0
    %1793 = vmatprep.subr.mxu0 0.0
    %1794 = vmatpush1.msra.mxu0 0.0
    %1795 = vmatprep.subr.mxu0 0.0
    %1796 = vmatpush1.msra.mxu0 0.0
    %1797 = vmatprep.subr.mxu0 0.0
    %1798 = vmatpush1.msra.mxu0 0.0
    %1799 = vmatprep.subr.mxu0 0.0
    %1800 = vmatpush1.msra.mxu0 0.0
    %1801 = vmatprep.subr.mxu0 0.0
    %1802 = vmatpush1.msra.mxu0 0.0
    %1803 = vmatprep.subr.mxu0 0.0
    %1804 = vmatpush1.msra.mxu0 0.0
    %1805 = vmatprep.subr.mxu0 0.0
    %1806 = vmatpush1.msra.mxu0 0.0
    %1807 = vmatprep.subr.mxu0 0.0
    %1808 = vmatpush1.msra.mxu0 0.0
    %1809 = vmatprep.subr.mxu0 0.0
    %1810 = vmatpush1.msra.mxu0 0.0
    %1811 = vmatprep.subr.mxu0 0.0
    %1812 = vmatpush1.msra.mxu0 %v95
    %1813 = vmatprep.subr.mxu0 0.0
    %1814 = vmatpush1.msra.mxu0 %v94
    %1815 = vmatprep.subr.mxu0 0.0
    %1816 = vmatpush1.msra.mxu0 %v93
    %1817 = vmatprep.subr.mxu0 0.0
    %1818 = vmatpush1.msra.mxu0 %v92
    %1819 = vmatprep.subr.mxu0 0.0
    %1820 = vmatpush2.msra.mxu0 0.0
    %1821 = vmatprep.subr.mxu0 0.0
    %1822 = vmatpush2.msra.mxu0 0.0
    %1823 = vmatprep.subr.mxu0 0.0
    %1824 = vmatpush2.msra.mxu0 0.0
    %1825 = vmatprep.subr.mxu0 0.0
    %1826 = vmatpush2.msra.mxu0 0.0
    %1827 = vmatprep.subr.mxu0 0.0
    %1828 = vmatpush2.msra.mxu0 0.0
    %1829 = vmatprep.subr.mxu0 0.0
    %1830 = vmatpush2.msra.mxu0 0.0
    %1831 = vmatprep.subr.mxu0 0.0
    %1832 = vmatpush2.msra.mxu0 0.0
    %1833 = vmatprep.subr.mxu0 0.0
    %1834 = vmatpush2.msra.mxu0 0.0
    %1835 = vmatprep.subr.mxu0 0.0
    %1836 = vmatpush2.msra.mxu0 0.0
    %1837 = vmatprep.subr.mxu0 0.0
    %1838 = vmatpush2.msra.mxu0 0.0
    %1839 = vmatprep.subr.mxu0 0.0
    %1840 = vmatpush2.msra.mxu0 0.0
    %1841 = vmatprep.subr.mxu0 0.0
    %1842 = vmatpush2.msra.mxu0 0.0
    %1843 = vmatprep.subr.mxu0 0.0
    %1844 = vmatpush2.msra.mxu0 0.0
    %1845 = vmatprep.subr.mxu0 0.0
    %1846 = vmatpush2.msra.mxu0 0.0
    %1847 = vmatprep.subr.mxu0 0.0
    %1848 = vmatpush2.msra.mxu0 0.0
    %1849 = vmatprep.subr.mxu0 0.0
    %1850 = vmatpush2.msra.mxu0 0.0
    %1851 = vmatprep.mubr.f32.mxu0 0.0
    %1852 = vmatmul.mubr.f32.gmra.mxu0 %v1785
    %v1853 = vpop.f32.mrf.mxu0
    %v1854 = vadd.f32 0.0, %v1853
    %v1855 = vpop.f32.mrf.mxu0
    %1856 = vdwg.mxu0
    %vm1857 = vcmp.gt.f32.partialorder %v1364, 0.0
    %v1858 = vsel %vm1857, %v1854, 0.0
    %v1860 = vsel %vm292, %v1858, 0
    %1862 = vmatprep.subr.mxu0 0.0
    %1863 = vmatpush1.msra.mxu0 0.0
    %1864 = vmatprep.subr.mxu0 0.0
    %1865 = vmatpush1.msra.mxu0 0.0
    %1866 = vmatprep.subr.mxu0 0.0
    %1867 = vmatpush1.msra.mxu0 0.0
    %1868 = vmatprep.subr.mxu0 0.0
    %1869 = vmatpush1.msra.mxu0 0.0
    %1870 = vmatprep.subr.mxu0 0.0
    %1871 = vmatpush1.msra.mxu0 0.0
    %1872 = vmatprep.subr.mxu0 0.0
    %1873 = vmatpush1.msra.mxu0 0.0
    %1874 = vmatprep.subr.mxu0 0.0
    %1875 = vmatpush1.msra.mxu0 0.0
    %1876 = vmatprep.subr.mxu0 0.0
    %1877 = vmatpush1.msra.mxu0 0.0
    %1878 = vmatprep.subr.mxu0 0.0
    %1879 = vmatpush1.msra.mxu0 0.0
    %1880 = vmatprep.subr.mxu0 0.0
    %1881 = vmatpush1.msra.mxu0 0.0
    %1882 = vmatprep.subr.mxu0 0.0
    %1883 = vmatpush1.msra.mxu0 0.0
    %1884 = vmatprep.subr.mxu0 0.0
    %1885 = vmatpush1.msra.mxu0 0.0
    %1886 = vmatprep.subr.mxu0 0.0
    %1887 = vmatpush1.msra.mxu0 %v91
    %1888 = vmatprep.subr.mxu0 0.0
    %1889 = vmatpush1.msra.mxu0 %v90
    %1890 = vmatprep.subr.mxu0 0.0
    %1891 = vmatpush1.msra.mxu0 %v89
    %1892 = vmatprep.subr.mxu0 0.0
    %1893 = vmatpush1.msra.mxu0 %v88
    %1894 = vmatprep.subr.mxu0 0.0
    %1895 = vmatpush2.msra.mxu0 0.0
    %1896 = vmatprep.subr.mxu0 0.0
    %1897 = vmatpush2.msra.mxu0 0.0
    %1898 = vmatprep.subr.mxu0 0.0
    %1899 = vmatpush2.msra.mxu0 0.0
    %1900 = vmatprep.subr.mxu0 0.0
    %1901 = vmatpush2.msra.mxu0 0.0
    %1902 = vmatprep.subr.mxu0 0.0
    %1903 = vmatpush2.msra.mxu0 0.0
    %1904 = vmatprep.subr.mxu0 0.0
    %1905 = vmatpush2.msra.mxu0 0.0
    %1906 = vmatprep.subr.mxu0 0.0
    %1907 = vmatpush2.msra.mxu0 0.0
    %1908 = vmatprep.subr.mxu0 0.0
    %1909 = vmatpush2.msra.mxu0 0.0
    %1910 = vmatprep.subr.mxu0 0.0
    %1911 = vmatpush2.msra.mxu0 0.0
    %1912 = vmatprep.subr.mxu0 0.0
    %1913 = vmatpush2.msra.mxu0 0.0
    %1914 = vmatprep.subr.mxu0 0.0
    %1915 = vmatpush2.msra.mxu0 0.0
    %1916 = vmatprep.subr.mxu0 0.0
    %1917 = vmatpush2.msra.mxu0 0.0
    %1918 = vmatprep.subr.mxu0 0.0
    %1919 = vmatpush2.msra.mxu0 0.0
    %1920 = vmatprep.subr.mxu0 0.0
    %1921 = vmatpush2.msra.mxu0 0.0
    %1922 = vmatprep.subr.mxu0 0.0
    %1923 = vmatpush2.msra.mxu0 0.0
    %1924 = vmatprep.subr.mxu0 0.0
    %1925 = vmatpush2.msra.mxu0 0.0
    %1926 = vmatprep.mubr.f32.mxu0 0.0
    %1927 = vmatmul.mubr.f32.gmra.mxu0 %v1860
    %v1928 = vpop.f32.mrf.mxu0
    %v1929 = vadd.f32 0.0, %v1928
    %v1930 = vpop.f32.mrf.mxu0
    %1931 = vdwg.mxu0
    %v1932 = vsub.f32 0.0, %v1283
    %v1933 = vmul.f32 %v1932, 1.442695
    %v1934 = vpow.pop %v1933
    %v1935 = vsub.f32 %v1290, %v1258
    %v1936 = vmul.f32 %v1290, -0.5
    %v1937 = vsub.f32 %v1929, %v1936
    %v1938 = vmul.f32 %v1935, -0.5
    %v1939 = vmul.f32 %v1938, %v1934
    %v1940 = vadd.f32 %v1937, %v1939
    %v1941 = vsub.f32 %v1940, %v1939
    %v1942 = vmul.f32 %v1285, 0.5
    %v1943 = vmul.f32 %v1942, %v1288
    %v1944 = vmul.f32 %v1940, %v1943
    %v1945 = vmul.f32 %v1935, 0.5
    %v1946 = vmul.f32 %v1945, %v1935
    %v1947 = vmul.f32 %v1946, %v1934
    %v1948 = vsub.f32 0.5, %v1947
    %v1949 = vmul.f32 %v1948, -0.5
    %v1950 = vadd.f32 %v1944, %v1949
    %v1951 = vmul.f32 %v1941, %v1941
    %v1952 = vsel %vm1233, %v1951, 0.0
    %1953 = vadd.xlane.f32.xlu0 %v1952
    %v1954 = vpop.xlane.xlu0 %1953
    %v1955 = vsel %vm1237, %v1954, 0.0
    %v1956 = vrot.slane %v1955, 4
    %v1957 = vadd.f32 %v1955, %v1956
    %v1958 = vrot.slane %v1957, 2
    %v1959 = vadd.f32 %v1957, %v1958
    %v1960 = vrot.slane %v1959, 1
    %v1961 = vadd.f32 %v1959, %v1960
    %v1962 = vrsqrt.pop %v1961
    %v1963 = vmul.f32 %v1961, %v1962
    %vm1964 = vcmp.eq.f32.partialorder %v1961, inf
    %v1965 = vsel %vm1964, %v1961, %v1963
    %vm1966 = vcmp.eq.f32.partialorder %v1961, 0.0
    %v1967 = vand.u32 %v1961, 2147483648
    %v1968 = vsel %vm1966, %v1967, %v1965
    %v1969 = vadd.f32 %v1968, 1e-06
    %v1970 = vrcp.pop %v1969
    %v1971 = vmul.f32 5.0, %v1970
    %v1972 = vmin.f32 %v1971, 1.0
    %v1973 = vmul.f32 %v1941, %v1972
    %v1974 = vmul.f32 %v1973, 0.1
    %v1975 = vadd.f32 %v1258, %v1974
    %v1976 = vmul.f32 %v1950, %v1950
    %v1977 = vsel %vm1233, %v1976, 0.0
    %1978 = vadd.xlane.f32.xlu0 %v1977
    %v1979 = vpop.xlane.xlu0 %1978
    %v1980 = vsel %vm1237, %v1979, 0.0
    %v1981 = vrot.slane %v1980, 4
    %v1982 = vadd.f32 %v1980, %v1981
    %v1983 = vrot.slane %v1982, 2
    %v1984 = vadd.f32 %v1982, %v1983
    %v1985 = vrot.slane %v1984, 1
    %v1986 = vadd.f32 %v1984, %v1985
    %v1987 = vrsqrt.pop %v1986
    %v1988 = vmul.f32 %v1986, %v1987
    %vm1989 = vcmp.eq.f32.partialorder %v1986, inf
    %v1990 = vsel %vm1989, %v1986, %v1988
    %vm1991 = vcmp.eq.f32.partialorder %v1986, 0.0
    %v1992 = vand.u32 %v1986, 2147483648
    %v1993 = vsel %vm1991, %v1992, %v1990
    %v1994 = vadd.f32 %v1993, 1e-06
    %v1995 = vrcp.pop %v1994
    %v1996 = vmul.f32 5.0, %v1995
    %v1997 = vmin.f32 %v1996, 1.0
    %v1998 = vmul.f32 %v1950, %v1997
    %v1999 = vmul.f32 %v1998, 0.1
    %v2000 = vadd.f32 %v1283, %v1999
    %s2001 = scalar_lea.vmem %s1, 4
    %v2002 = vld [vmem:[%s2001] sm:$0x3]
    %v2003 = vmul.f32 %v2000, 0.5
    %v2004 = vmul.f32 %v2003, 1.442695
    %v2005 = vpow.pop %v2004
    %v2006 = vmul.f32 %v2002, %v2005
    %v2007 = vadd.f32 %v1975, %v2006
    %v2009 = vsel %vm544, %v2007, 0
    %2011 = vmatprep.subr.mxu0 0.0
    %2012 = vmatpush1.msra.mxu0 0.0
    %2013 = vmatprep.subr.mxu0 0.0
    %2014 = vmatpush1.msra.mxu0 0.0
    %2015 = vmatprep.subr.mxu0 0.0
    %2016 = vmatpush1.msra.mxu0 0.0
    %2017 = vmatprep.subr.mxu0 0.0
    %2018 = vmatpush1.msra.mxu0 0.0
    %2019 = vmatprep.subr.mxu0 0.0
    %2020 = vmatpush1.msra.mxu0 0.0
    %2021 = vmatprep.subr.mxu0 0.0
    %2022 = vmatpush1.msra.mxu0 0.0
    %2023 = vmatprep.subr.mxu0 0.0
    %2024 = vmatpush1.msra.mxu0 0.0
    %2025 = vmatprep.subr.mxu0 0.0
    %2026 = vmatpush1.msra.mxu0 0.0
    %2027 = vmatprep.subr.mxu0 0.0
    %2028 = vmatpush1.msra.mxu0 0.0
    %2029 = vmatprep.subr.mxu0 0.0
    %2030 = vmatpush1.msra.mxu0 0.0
    %2031 = vmatprep.subr.mxu0 0.0
    %2032 = vmatpush1.msra.mxu0 0.0
    %2033 = vmatprep.subr.mxu0 0.0
    %2034 = vmatpush1.msra.mxu0 0.0
    %2035 = vmatprep.subr.mxu0 0.0
    %2036 = vmatpush1.msra.mxu0 0.0
    %2037 = vmatprep.subr.mxu0 0.0
    %2038 = vmatpush1.msra.mxu0 0.0
    %2039 = vmatprep.subr.mxu0 0.0
    %2040 = vmatpush1.msra.mxu0 0.0
    %2041 = vmatprep.subr.mxu0 0.0
    %2042 = vmatpush1.msra.mxu0 %v64
    %2043 = vmatprep.subr.mxu0 0.0
    %2044 = vmatpush2.msra.mxu0 0.0
    %2045 = vmatprep.subr.mxu0 0.0
    %2046 = vmatpush2.msra.mxu0 0.0
    %2047 = vmatprep.subr.mxu0 0.0
    %2048 = vmatpush2.msra.mxu0 0.0
    %2049 = vmatprep.subr.mxu0 0.0
    %2050 = vmatpush2.msra.mxu0 0.0
    %2051 = vmatprep.subr.mxu0 0.0
    %2052 = vmatpush2.msra.mxu0 0.0
    %2053 = vmatprep.subr.mxu0 0.0
    %2054 = vmatpush2.msra.mxu0 0.0
    %2055 = vmatprep.subr.mxu0 0.0
    %2056 = vmatpush2.msra.mxu0 0.0
    %2057 = vmatprep.subr.mxu0 0.0
    %2058 = vmatpush2.msra.mxu0 0.0
    %2059 = vmatprep.subr.mxu0 0.0
    %2060 = vmatpush2.msra.mxu0 0.0
    %2061 = vmatprep.subr.mxu0 0.0
    %2062 = vmatpush2.msra.mxu0 0.0
    %2063 = vmatprep.subr.mxu0 0.0
    %2064 = vmatpush2.msra.mxu0 0.0
    %2065 = vmatprep.subr.mxu0 0.0
    %2066 = vmatpush2.msra.mxu0 0.0
    %2067 = vmatprep.subr.mxu0 0.0
    %2068 = vmatpush2.msra.mxu0 0.0
    %2069 = vmatprep.subr.mxu0 0.0
    %2070 = vmatpush2.msra.mxu0 0.0
    %2071 = vmatprep.subr.mxu0 0.0
    %2072 = vmatpush2.msra.mxu0 0.0
    %2073 = vmatprep.subr.mxu0 0.0
    %2074 = vmatpush2.msra.mxu0 0.0
    %2075 = vmatprep.mubr.f32.mxu0 0.0
    %2076 = vmatmul.mubr.f32.gmra.mxu0 %v2009
    %v2077 = vpop.f32.mrf.mxu0
    %v2078 = vadd.f32 %v542, %v2077
    %v2079 = vpop.f32.mrf.mxu0
    %2080 = vdwg.mxu0
    %v2081 = vmax.f32 %v2078, 0.0
    %v2083 = vsel %vm292, %v2081, 0
    %2085 = vmatprep.subr.mxu0 0.0
    %2086 = vmatpush1.msra.mxu0 0.0
    %2087 = vmatprep.subr.mxu0 0.0
    %2088 = vmatpush1.msra.mxu0 0.0
    %2089 = vmatprep.subr.mxu0 0.0
    %2090 = vmatpush1.msra.mxu0 0.0
    %2091 = vmatprep.subr.mxu0 0.0
    %2092 = vmatpush1.msra.mxu0 0.0
    %2093 = vmatprep.subr.mxu0 0.0
    %2094 = vmatpush1.msra.mxu0 0.0
    %2095 = vmatprep.subr.mxu0 0.0
    %2096 = vmatpush1.msra.mxu0 0.0
    %2097 = vmatprep.subr.mxu0 0.0
    %2098 = vmatpush1.msra.mxu0 0.0
    %2099 = vmatprep.subr.mxu0 0.0
    %2100 = vmatpush1.msra.mxu0 0.0
    %2101 = vmatprep.subr.mxu0 0.0
    %2102 = vmatpush1.msra.mxu0 0.0
    %2103 = vmatprep.subr.mxu0 0.0
    %2104 = vmatpush1.msra.mxu0 0.0
    %2105 = vmatprep.subr.mxu0 0.0
    %2106 = vmatpush1.msra.mxu0 0.0
    %2107 = vmatprep.subr.mxu0 0.0
    %2108 = vmatpush1.msra.mxu0 0.0
    %2109 = vmatprep.subr.mxu0 0.0
    %2110 = vmatpush1.msra.mxu0 %v69
    %2111 = vmatprep.subr.mxu0 0.0
    %2112 = vmatpush1.msra.mxu0 %v68
    %2113 = vmatprep.subr.mxu0 0.0
    %2114 = vmatpush1.msra.mxu0 %v67
    %2115 = vmatprep.subr.mxu0 0.0
    %2116 = vmatpush1.msra.mxu0 %v66
    %2117 = vmatprep.subr.mxu0 0.0
    %2118 = vmatpush2.msra.mxu0 0.0
    %2119 = vmatprep.subr.mxu0 0.0
    %2120 = vmatpush2.msra.mxu0 0.0
    %2121 = vmatprep.subr.mxu0 0.0
    %2122 = vmatpush2.msra.mxu0 0.0
    %2123 = vmatprep.subr.mxu0 0.0
    %2124 = vmatpush2.msra.mxu0 0.0
    %2125 = vmatprep.subr.mxu0 0.0
    %2126 = vmatpush2.msra.mxu0 0.0
    %2127 = vmatprep.subr.mxu0 0.0
    %2128 = vmatpush2.msra.mxu0 0.0
    %2129 = vmatprep.subr.mxu0 0.0
    %2130 = vmatpush2.msra.mxu0 0.0
    %2131 = vmatprep.subr.mxu0 0.0
    %2132 = vmatpush2.msra.mxu0 0.0
    %2133 = vmatprep.subr.mxu0 0.0
    %2134 = vmatpush2.msra.mxu0 0.0
    %2135 = vmatprep.subr.mxu0 0.0
    %2136 = vmatpush2.msra.mxu0 0.0
    %2137 = vmatprep.subr.mxu0 0.0
    %2138 = vmatpush2.msra.mxu0 0.0
    %2139 = vmatprep.subr.mxu0 0.0
    %2140 = vmatpush2.msra.mxu0 0.0
    %2141 = vmatprep.subr.mxu0 0.0
    %2142 = vmatpush2.msra.mxu0 0.0
    %2143 = vmatprep.subr.mxu0 0.0
    %2144 = vmatpush2.msra.mxu0 0.0
    %2145 = vmatprep.subr.mxu0 0.0
    %2146 = vmatpush2.msra.mxu0 0.0
    %2147 = vmatprep.subr.mxu0 0.0
    %2148 = vmatpush2.msra.mxu0 0.0
    %2149 = vmatprep.mubr.f32.mxu0 0.0
    %2150 = vmatmul.mubr.f32.gmra.mxu0 %v2083
    %v2151 = vpop.f32.mrf.mxu0
    %v2152 = vadd.f32 %v623, %v2151
    %v2153 = vpop.f32.mrf.mxu0
    %2154 = vdwg.mxu0
    %v2155 = vmax.f32 %v2152, 0.0
    %v2157 = vsel %vm292, %v2155, 0
    %2159 = vmatprep.subr.mxu0 0.0
    %2160 = vmatpush1.msra.mxu0 0.0
    %2161 = vmatprep.subr.mxu0 0.0
    %2162 = vmatpush1.msra.mxu0 0.0
    %2163 = vmatprep.subr.mxu0 0.0
    %2164 = vmatpush1.msra.mxu0 0.0
    %2165 = vmatprep.subr.mxu0 0.0
    %2166 = vmatpush1.msra.mxu0 0.0
    %2167 = vmatprep.subr.mxu0 0.0
    %2168 = vmatpush1.msra.mxu0 0.0
    %2169 = vmatprep.subr.mxu0 0.0
    %2170 = vmatpush1.msra.mxu0 0.0
    %2171 = vmatprep.subr.mxu0 0.0
    %2172 = vmatpush1.msra.mxu0 0.0
    %2173 = vmatprep.subr.mxu0 0.0
    %2174 = vmatpush1.msra.mxu0 0.0
    %2175 = vmatprep.subr.mxu0 0.0
    %2176 = vmatpush1.msra.mxu0 0.0
    %2177 = vmatprep.subr.mxu0 0.0
    %2178 = vmatpush1.msra.mxu0 0.0
    %2179 = vmatprep.subr.mxu0 0.0
    %2180 = vmatpush1.msra.mxu0 0.0
    %2181 = vmatprep.subr.mxu0 0.0
    %2182 = vmatpush1.msra.mxu0 0.0
    %2183 = vmatprep.subr.mxu0 %v84
    %2184 = vmatpush1.msra.mxu0 %v83
    %2185 = vmatprep.subr.mxu0 %v80
    %2186 = vmatpush1.msra.mxu0 %v79
    %2187 = vmatprep.subr.mxu0 %v76
    %2188 = vmatpush1.msra.mxu0 %v75
    %2189 = vmatprep.subr.mxu0 %v72
    %2190 = vmatpush1.msra.mxu0 %v71
    %2191 = vmatprep.subr.mxu0 0.0
    %2192 = vmatpush2.msra.mxu0 0.0
    %2193 = vmatprep.subr.mxu0 0.0
    %2194 = vmatpush2.msra.mxu0 0.0
    %2195 = vmatprep.subr.mxu0 0.0
    %2196 = vmatpush2.msra.mxu0 0.0
    %2197 = vmatprep.subr.mxu0 0.0
    %2198 = vmatpush2.msra.mxu0 0.0
    %2199 = vmatprep.subr.mxu0 0.0
    %2200 = vmatpush2.msra.mxu0 0.0
    %2201 = vmatprep.subr.mxu0 0.0
    %2202 = vmatpush2.msra.mxu0 0.0
    %2203 = vmatprep.subr.mxu0 0.0
    %2204 = vmatpush2.msra.mxu0 0.0
    %2205 = vmatprep.subr.mxu0 0.0
    %2206 = vmatpush2.msra.mxu0 0.0
    %2207 = vmatprep.subr.mxu0 0.0
    %2208 = vmatpush2.msra.mxu0 0.0
    %2209 = vmatprep.subr.mxu0 0.0
    %2210 = vmatpush2.msra.mxu0 0.0
    %2211 = vmatprep.subr.mxu0 0.0
    %2212 = vmatpush2.msra.mxu0 0.0
    %2213 = vmatprep.subr.mxu0 0.0
    %2214 = vmatpush2.msra.mxu0 0.0
    %2215 = vmatprep.subr.mxu0 0.0
    %2216 = vmatpush2.msra.mxu0 0.0
    %2217 = vmatprep.subr.mxu0 0.0
    %2218 = vmatpush2.msra.mxu0 0.0
    %2219 = vmatprep.subr.mxu0 0.0
    %2220 = vmatpush2.msra.mxu0 0.0
    %2221 = vmatprep.subr.mxu0 0.0
    %2222 = vmatpush2.msra.mxu0 0.0
    %2223 = vmatprep.mubr.f32.mxu0 0.0
    %2224 = vmatmul.mubr.f32.gmra.mxu0 %v2157
    %v2225 = vpop.f32.mrf.mxu0
    %v2226 = vadd.f32 %v703, %v2225
    %v2227 = vpop.f32.mrf.mxu0
    %v2228 = vadd.f32 %v707, %v2227
    %2229 = vdwg.mxu0
    %2230 = vmatprep.subr.mxu0 0.0
    %2231 = vmatpush1.msra.mxu0 0.0
    %2232 = vmatprep.subr.mxu0 0.0
    %2233 = vmatpush1.msra.mxu0 0.0
    %2234 = vmatprep.subr.mxu0 0.0
    %2235 = vmatpush1.msra.mxu0 0.0
    %2236 = vmatprep.subr.mxu0 0.0
    %2237 = vmatpush1.msra.mxu0 0.0
    %2238 = vmatprep.subr.mxu0 0.0
    %2239 = vmatpush1.msra.mxu0 0.0
    %2240 = vmatprep.subr.mxu0 0.0
    %2241 = vmatpush1.msra.mxu0 0.0
    %2242 = vmatprep.subr.mxu0 0.0
    %2243 = vmatpush1.msra.mxu0 0.0
    %2244 = vmatprep.subr.mxu0 0.0
    %2245 = vmatpush1.msra.mxu0 0.0
    %2246 = vmatprep.subr.mxu0 0.0
    %2247 = vmatpush1.msra.mxu0 0.0
    %2248 = vmatprep.subr.mxu0 0.0
    %2249 = vmatpush1.msra.mxu0 0.0
    %2250 = vmatprep.subr.mxu0 0.0
    %2251 = vmatpush1.msra.mxu0 0.0
    %2252 = vmatprep.subr.mxu0 0.0
    %2253 = vmatpush1.msra.mxu0 0.0
    %2254 = vmatprep.subr.mxu0 %v86
    %2255 = vmatpush1.msra.mxu0 %v85
    %2256 = vmatprep.subr.mxu0 %v82
    %2257 = vmatpush1.msra.mxu0 %v81
    %2258 = vmatprep.subr.mxu0 %v78
    %2259 = vmatpush1.msra.mxu0 %v77
    %2260 = vmatprep.subr.mxu0 %v74
    %2261 = vmatpush1.msra.mxu0 %v73
    %2262 = vmatprep.subr.mxu0 0.0
    %2263 = vmatpush2.msra.mxu0 0.0
    %2264 = vmatprep.subr.mxu0 0.0
    %2265 = vmatpush2.msra.mxu0 0.0
    %2266 = vmatprep.subr.mxu0 0.0
    %2267 = vmatpush2.msra.mxu0 0.0
    %2268 = vmatprep.subr.mxu0 0.0
    %2269 = vmatpush2.msra.mxu0 0.0
    %2270 = vmatprep.subr.mxu0 0.0
    %2271 = vmatpush2.msra.mxu0 0.0
    %2272 = vmatprep.subr.mxu0 0.0
    %2273 = vmatpush2.msra.mxu0 0.0
    %2274 = vmatprep.subr.mxu0 0.0
    %2275 = vmatpush2.msra.mxu0 0.0
    %2276 = vmatprep.subr.mxu0 0.0
    %2277 = vmatpush2.msra.mxu0 0.0
    %2278 = vmatprep.subr.mxu0 0.0
    %2279 = vmatpush2.msra.mxu0 0.0
    %2280 = vmatprep.subr.mxu0 0.0
    %2281 = vmatpush2.msra.mxu0 0.0
    %2282 = vmatprep.subr.mxu0 0.0
    %2283 = vmatpush2.msra.mxu0 0.0
    %2284 = vmatprep.subr.mxu0 0.0
    %2285 = vmatpush2.msra.mxu0 0.0
    %2286 = vmatprep.subr.mxu0 0.0
    %2287 = vmatpush2.msra.mxu0 0.0
    %2288 = vmatprep.subr.mxu0 0.0
    %2289 = vmatpush2.msra.mxu0 0.0
    %2290 = vmatprep.subr.mxu0 0.0
    %2291 = vmatpush2.msra.mxu0 0.0
    %2292 = vmatprep.subr.mxu0 0.0
    %2293 = vmatpush2.msra.mxu0 0.0
    %2294 = vmatprep.mubr.f32.mxu0 0.0
    %2295 = vmatmul.mubr.f32.gmra.mxu0 %v2157
    %v2296 = vpop.f32.mrf.mxu0
    %v2297 = vadd.f32 %v711, %v2296
    %v2298 = vpop.f32.mrf.mxu0
    %v2299 = vadd.f32 %v715, %v2298
    %2300 = vdwg.mxu0
    %v2301 = vadd.f32 %v2297, 1.837877
    %v2302 = vadd.f32 %v2299, 1.837877
    %v2305 = vcombine.low %v2226, %v2228
    %v2307 = vunpack.c.l.s4 1983009808
    %v2308 = vunpack.c.0.s8 %v2307
    %v2309 = vlaneseq
    %v2310 = vshrl.u32 %v2309, 7
    %v2311 = vsub.s32 %v2308, %v2310
    %v2312 = vrot.slane %v2305, %v2311
    %v2314 = vsub.f32 %v63, %v2312
    %v2315 = vmul.f32 %v2314, %v2314
    %v2316 = vsub.f32 0.0, %v2297
    %v2317 = vsub.f32 0.0, %v2299
    %v2318 = vmul.f32 %v2316, 1.442695
    %v2319 = vpow.pop %v2318
    %v2320 = vmul.f32 %v2317, 1.442695
    %v2321 = vpow.pop %v2320
    %v2324 = vcombine.low %v2319, %v2321
    %v2326 = vunpack.c.l.s4 1983009808
    %v2327 = vunpack.c.0.s8 %v2326
    %v2328 = vlaneseq
    %v2329 = vshrl.u32 %v2328, 7
    %v2330 = vsub.s32 %v2327, %v2329
    %v2331 = vrot.slane %v2324, %v2330
    %v2333 = vmul.f32 %v2315, %v2331
    %v2336 = vunpack.c.l.s4 1983009808
    %v2337 = vunpack.c.0.s8 %v2336
    %v2338 = vlaneseq
    %v2339 = vshrl.u32 %v2338, 7
    %v2340 = vsub.s32 %v2337, %v2339
    %v2341 = vrot.slane %v2333, %v2340
    %v2342 = vcombine.high %v2341, %v2341
    %v2345 = vadd.f32 %v2301, %v2341
    %v2346 = vadd.f32 %v2302, %v2342
    %v2347 = vsel %vm1237, %v2345, 0.0
    %v2348 = vsel %vm1237, %v2346, 0.0
    %v2349 = vadd.f32 %v2347, %v2348
    %2350 = vadd.xlane.f32.xlu0 %v2349
    %v2351 = vpop.xlane.xlu0 %2350
    %v2352 = vmul.f32 %v2351, -0.5
    %v2353 = vmul.f32 %v2007, %v2007
    %v2354 = vadd.f32 %v2353, 1.837877
    %v2355 = vsel %vm1233, %v2354, 0.0
    %2356 = vadd.xlane.f32.xlu0 %v2355
    %v2357 = vpop.xlane.xlu0 %2356
    %v2358 = vmul.f32 %v2357, -0.5
    %v2359 = vadd.f32 %v2000, 1.837877
    %v2360 = vsub.f32 %v2007, %v1975
    %v2361 = vmul.f32 %v2360, %v2360
    %v2362 = vsub.f32 0.0, %v2000
    %v2363 = vmul.f32 %v2362, 1.442695
    %v2364 = vpow.pop %v2363
    %v2365 = vmul.f32 %v2361, %v2364
    %v2366 = vadd.f32 %v2359, %v2365
    %v2367 = vsel %vm1233, %v2366, 0.0
    %2368 = vadd.xlane.f32.xlu0 %v2367
    %v2369 = vpop.xlane.xlu0 %2368
    %v2370 = vmul.f32 %v2369, -0.5
    %v2371 = vadd.f32 %v2352, %v2358
    %v2372 = vsub.f32 %v2371, %v2370
    %v2373 = vsel %vm1237, %v2372, 0.0
    %v2374 = vrot.slane %v2373, 4
    %v2375 = vadd.f32 %v2373, %v2374
    %v2376 = vrot.slane %v2375, 2
    %v2377 = vadd.f32 %v2375, %v2376
    %v2378 = vrot.slane %v2377, 1
    %v2379 = vadd.f32 %v2377, %v2378
    %v2380 = vrcp.pop 2.0
    %v2381 = vmul.f32 %v2379, %v2380
    %v2382 = vsub.f32 0.0, %v2381
    %vm2383 = vcmask 0
    %2384 = vst.msk [vmem:[#allocation2] sm:$0x1] %vm2383, %v2382
    // Predicated region
    $region78: #{savae_forward.1} parent=1 // pred_check
      _
    $region79: #{savae_forward.1} parent=1 // pred_check_branch
      %2386 = sbr.rel (0) target = $region81
    $region80: #{savae_forward.1} parent=1 // pred_region
      %s2388 = ssub.s32 16, 16
      %2389 = vsyncadd [#allocation3], %s2388
      %s2391 = sshll.u32 [#allocation2], 4
      %s2392 = int_to_ptr.vmem [resolvable:$true] %s2391
      %2394 = dma.vmem_to_hbm [thread:$0]  %s2392, 16, %s19, [#allocation3]
    $region81: #{savae_forward.1} parent=1 // pred_fallthru
      _
    // Predicated region
    $region82: #{savae_forward.1} parent=1 // pred_check
      _
    $region83: #{savae_forward.1} parent=1 // pred_check_branch
      %2396 = sbr.rel (0) target = $region85
    $region84: #{savae_forward.1} parent=1 // pred_region
      %2397 = dma.done [#allocation3], 16
    $region85: #{savae_forward.1} parent=1 // pred_fallthru
      _
    %2398 = vsyncpa [#allocation3], 1

</llo_original>
